<compile_context>
chip_gen: v5e
topology: v5e:2x2
jax: 0.10.0
libtpu: 0.0.40
codegen_flags: <defaults>
</compile_context>

<pallas_src>
import functools

import jax
import jax.numpy as jnp
from jax.experimental import pallas as pl
from jax.experimental.pallas import tpu as pltpu  # noqa: F401  (TPU backend import)

D_MODEL = 32
NHEAD = 4
DIM_FF = 64
EPS = 1e-5


# --------------------------- Fused Pallas kernel ---------------------------

def _decoder_layer_kernel(
    tgt_ref, qpos_ref, mem_ref, pos_ref,
    sa_wqkv_ref, sa_bqkv_ref, sa_wo_ref, sa_bo_ref,
    ca_wqkv_ref, ca_bqkv_ref, ca_wo_ref, ca_bo_ref,
    w1_ref, b1_ref, w2_ref, b2_ref,
    norms_ref,
    o_ref,
    *, nhead):
    f32 = jnp.float32
    N, Lt, E = tgt_ref.shape
    Lm = mem_ref.shape[1]
    Dh = E // nhead
    scale = 1.0 / (Dh ** 0.5)

    def layer_norm(x, g, b):
        mu = jnp.mean(x, axis=-1, keepdims=True)
        xc = x - mu
        var = jnp.mean(xc * xc, axis=-1, keepdims=True)
        return xc * jax.lax.rsqrt(var + EPS) * g + b

    def mha(q_in, k_in, v_in, Lq, Lk, wqkv, bqkv, wo, bo, fuse_qk):
        # q_in: (N*Lq, E); k_in, v_in: (N*Lk, E). wqkv: (E, 3E); wo: (E, E) (pre-transposed).
        if fuse_qk:
            # q and k share the same input -> one (E, 2E)-wide matmul (better MXU fill).
            qk = jnp.dot(q_in, wqkv[:, :2 * E], preferred_element_type=f32) + bqkv[:, :2 * E]
            q, k = qk[:, :E], qk[:, E:2 * E]
        else:
            q = jnp.dot(q_in, wqkv[:, :E], preferred_element_type=f32) + bqkv[:, :E]
            k = jnp.dot(k_in, wqkv[:, E:2 * E], preferred_element_type=f32) + bqkv[:, E:2 * E]
        v = jnp.dot(v_in, wqkv[:, 2 * E:], preferred_element_type=f32) + bqkv[:, 2 * E:]

        q3 = q.reshape(N, Lq, E)
        k3 = k.reshape(N, Lk, E)
        v3 = v.reshape(N, Lk, E)

        # Output-projection bias folded in up-front; per-head output projections accumulated:
        #   concat_h(o_h) @ Wo^T == sum_h o_h @ Wo^T[h*Dh:(h+1)*Dh, :]
        out = jnp.broadcast_to(bo, (N * Lq, E))
        for h in range(nhead):          # static unroll: all heads in one kernel step (no grid)
            sl = slice(h * Dh, (h + 1) * Dh)
            qh, kh, vh = q3[:, :, sl], k3[:, :, sl], v3[:, :, sl]
            # Batched dots (batch dim = N); contraction on last dims, no explicit K transpose.
            s = jnp.einsum('nqd,nkd->nqk', qh, kh, preferred_element_type=f32) * scale
            m = jnp.max(s, axis=-1, keepdims=True)
            p = jnp.exp(s - m)
            denom = jnp.sum(p, axis=-1, keepdims=True)
            p = p * pl.reciprocal(denom, approx=True)        # EUP divide
            oh = jnp.einsum('nqk,nkd->nqd', p, vh, preferred_element_type=f32)  # (N, Lq, Dh)
            out = out + jnp.dot(oh.reshape(N * Lq, Dh), wo[sl, :],
                                preferred_element_type=f32)
        return out

    x = tgt_ref[...].reshape(N * Lt, E)
    qpos = qpos_ref[...].reshape(N * Lt, E)
    mem = mem_ref[...].reshape(N * Lm, E)
    mpos = pos_ref[...].reshape(N * Lm, E)
    nrm = norms_ref[...]                      # (6, E): [g1, b1, g2, b2, g3, b3]

    # ---- self-attention + residual + norm1 ----
    xp = x + qpos
    sa = mha(xp, xp, x, Lt, Lt, sa_wqkv_ref[...], sa_bqkv_ref[...],
             sa_wo_ref[...], sa_bo_ref[...], fuse_qk=True)
    t1 = layer_norm(x + sa, nrm[0:1], nrm[1:2])

    # ---- cross-attention + residual + norm2 ----
    ca = mha(t1 + qpos, mem + mpos, mem, Lt, Lm, ca_wqkv_ref[...], ca_bqkv_ref[...],
             ca_wo_ref[...], ca_bo_ref[...], fuse_qk=False)
    t2 = layer_norm(t1 + ca, nrm[2:3], nrm[3:4])

    # ---- feed-forward + residual + norm3 ----
    h = jnp.maximum(jnp.dot(t2, w1_ref[...], preferred_element_type=f32) + b1_ref[...], 0.0)
    ff = jnp.dot(h, w2_ref[...], preferred_element_type=f32) + b2_ref[...]
    out = layer_norm(t2 + ff, nrm[4:5], nrm[5:6])

    o_ref[...] = out.reshape(N, Lt, E)
    # TODO(synk): attn_mask / key_padding_mask hooks not implemented (always None in this forward).


# --------------------------- Wrapper (single pallas_call) ---------------------------

@functools.partial(jax.jit, static_argnames=("nhead",))
def transformer_decoder_layer(tgt, memory, params, pos=None, query_pos=None, nhead=NHEAD):
    """forward_post semantics (normalize_before=False); dropouts are identity."""
    Lt, N, E = tgt.shape

    qpos = jnp.zeros_like(tgt) if query_pos is None else query_pos
    mpos = jnp.zeros_like(memory) if pos is None else pos

    # Batch-first so heads are handled with batched dots inside the kernel
    # (tiny one-time XLA transposes before the single fused launch).
    tgt_b, qpos_b = tgt.transpose(1, 0, 2), qpos.transpose(1, 0, 2)
    mem_b, pos_b = memory.transpose(1, 0, 2), mpos.transpose(1, 0, 2)

    sa, ca = params["self_attn"], params["cross_attn"]
    # Weights pre-transposed to (in, out) layout; the 6 LayerNorm vectors packed into 1 operand.
    # (In a real model these would be prepared once at init.)
    norms = jnp.stack([params["norm1_w"], params["norm1_b"],
                       params["norm2_w"], params["norm2_b"],
                       params["norm3_w"], params["norm3_b"]], axis=0)

    kernel = functools.partial(_decoder_layer_kernel, nhead=nhead)
    out_b = pl.pallas_call(
        kernel,
        out_shape=jax.ShapeDtypeStruct((N, Lt, E), jnp.float32),
    )(
        tgt_b, qpos_b, mem_b, pos_b,
        sa["in_proj_weight"].T, sa["in_proj_bias"][None, :],
        sa["out_proj_weight"].T, sa["out_proj_bias"][None, :],
        ca["in_proj_weight"].T, ca["in_proj_bias"][None, :],
        ca["out_proj_weight"].T, ca["out_proj_bias"][None, :],
        params["linear1_w"].T, params["linear1_b"][None, :],
        params["linear2_w"].T, params["linear2_b"][None, :],
        norms,
    )
    return out_b.transpose(1, 0, 2)


# --------------------------- Pure-JAX reference ---------------------------

def _ref_mha(query, key, value, p, nhead):
    Lq, N, E = query.shape
    Lk = key.shape[0]
    Dh = E // nhead
    in_w, in_b = p["in_proj_weight"], p["in_proj_bias"]
    q = query.reshape(-1, E) @ in_w[:E].T + in_b[:E]
    k = key.reshape(-1, E) @ in_w[E:2 * E].T + in_b[E:2 * E]
    v = value.reshape(-1, E) @ in_w[2 * E:].T + in_b[2 * E:]
    q = q.reshape(Lq, N * nhead, Dh).transpose(1, 0, 2)
    k = k.reshape(Lk, N * nhead, Dh).transpose(1, 0, 2)
    v = v.reshape(Lk, N * nhead, Dh).transpose(1, 0, 2)
    s = jnp.einsum("hqd,hkd->hqk", q, k) / (Dh ** 0.5)
    a = jax.nn.softmax(s, axis=-1)
    o = jnp.einsum("hqk,hkd->hqd", a, v)
    o = o.transpose(1, 0, 2).reshape(Lq * N, E)
    o = o @ p["out_proj_weight"].T + p["out_proj_bias"]
    return o.reshape(Lq, N, E)


def _ref_ln(x, g, b):
    mu = jnp.mean(x, axis=-1, keepdims=True)
    xc = x - mu
    var = jnp.mean(xc * xc, axis=-1, keepdims=True)
    return xc * jax.lax.rsqrt(var + EPS) * g + b


def reference(tgt, memory, params, pos, query_pos, nhead=NHEAD):
    qk = tgt + query_pos
    tgt = _ref_ln(tgt + _ref_mha(qk, qk, tgt, params["self_attn"], nhead),
                  params["norm1_w"], params["norm1_b"])
    tgt = _ref_ln(tgt + _ref_mha(tgt + query_pos, memory + pos, memory,
                                 params["cross_attn"], nhead),
                  params["norm2_w"], params["norm2_b"])
    h = jnp.maximum(tgt @ params["linear1_w"].T + params["linear1_b"], 0.0)
    tgt = _ref_ln(tgt + (h @ params["linear2_w"].T + params["linear2_b"]),
                  params["norm3_w"], params["norm3_b"])
    return tgt


# --------------------------- Parameter init ---------------------------

def init_params(key):
    ks = jax.random.split(key, 12)
    s = 0.02

    def attn_params(k1, k2):
        return {
            "in_proj_weight": s * jax.random.normal(k1, (3 * D_MODEL, D_MODEL), jnp.float32),
            "in_proj_bias": jnp.zeros((3 * D_MODEL,), jnp.float32),
            "out_proj_weight": s * jax.random.normal(k2, (D_MODEL, D_MODEL), jnp.float32),
            "out_proj_bias": jnp.zeros((D_MODEL,), jnp.float32),
        }

    return {
        "self_attn": attn_params(ks[0], ks[1]),
        "cross_attn": attn_params(ks[2], ks[3]),
        "linear1_w": s * jax.random.normal(ks[4], (DIM_FF, D_MODEL), jnp.float32),
        "linear1_b": jnp.zeros((DIM_FF,), jnp.float32),
        "linear2_w": s * jax.random.normal(ks[5], (D_MODEL, DIM_FF), jnp.float32),
        "linear2_b": jnp.zeros((D_MODEL,), jnp.float32),
        "norm1_w": jnp.ones((D_MODEL,), jnp.float32),
        "norm1_b": jnp.zeros((D_MODEL,), jnp.float32),
        "norm2_w": jnp.ones((D_MODEL,), jnp.float32),
        "norm2_b": jnp.zeros((D_MODEL,), jnp.float32),
        "norm3_w": jnp.ones((D_MODEL,), jnp.float32),
        "norm3_b": jnp.zeros((D_MODEL,), jnp.float32),
    }


if __name__ == "__main__":
    key = jax.random.PRNGKey(0)
    k_tgt, k_mem, k_qpos, k_pos, k_par = jax.random.split(key, 5)

    Lt, Lm, N = 8, 10, 2
    tgt = jax.random.normal(k_tgt, (Lt, N, D_MODEL), jnp.float32)
    memory = jax.random.normal(k_mem, (Lm, N, D_MODEL), jnp.float32)
    query_pos = jax.random.normal(k_qpos, (Lt, N, D_MODEL), jnp.float32)
    pos = jax.random.normal(k_pos, (Lm, N, D_MODEL), jnp.float32)
    params = init_params(k_par)

    out = transformer_decoder_layer(tgt, memory, params, pos=pos, query_pos=query_pos)
    out = jax.block_until_ready(out)

    ref = reference(tgt, memory, params, pos, query_pos)
    assert out.shape == (Lt, N, D_MODEL)
    assert bool(jnp.all(jnp.isfinite(out)))
    assert bool(jnp.allclose(out, ref, atol=1e-3, rtol=1e-3)), "mismatch vs pure-JAX reference"

    print("KERNEL_OK")
</pallas_src>

<mosaic_0001>
module attributes {stable_mosaic.version = 11 : i64} {
  func.func @_decoder_layer_kernel(%arg0: memref<2x8x32xf32, #tpu.memory_space<vmem>>, %arg1: memref<2x8x32xf32, #tpu.memory_space<vmem>>, %arg2: memref<2x10x32xf32, #tpu.memory_space<vmem>>, %arg3: memref<2x10x32xf32, #tpu.memory_space<vmem>>, %arg4: memref<32x96xf32, #tpu.memory_space<vmem>>, %arg5: memref<1x96xf32, #tpu.memory_space<vmem>>, %arg6: memref<32x32xf32, #tpu.memory_space<vmem>>, %arg7: memref<1x32xf32, #tpu.memory_space<vmem>>, %arg8: memref<32x96xf32, #tpu.memory_space<vmem>>, %arg9: memref<1x96xf32, #tpu.memory_space<vmem>>, %arg10: memref<32x32xf32, #tpu.memory_space<vmem>>, %arg11: memref<1x32xf32, #tpu.memory_space<vmem>>, %arg12: memref<32x64xf32, #tpu.memory_space<vmem>>, %arg13: memref<1x64xf32, #tpu.memory_space<vmem>>, %arg14: memref<64x32xf32, #tpu.memory_space<vmem>>, %arg15: memref<1x32xf32, #tpu.memory_space<vmem>>, %arg16: memref<6x32xf32, #tpu.memory_space<vmem>>, %arg17: memref<2x8x32xf32, #tpu.memory_space<vmem>>) attributes {dimension_semantics = [], scalar_prefetch = 0 : i64, scratch_operands = 0 : i64, tpu.core_type = #tpu.core_type<tc>} {
    %c0 = arith.constant 0 : index
    %c0_0 = arith.constant 0 : index
    %c0_1 = arith.constant 0 : index
    %0 = vector.load %arg0[%c0, %c0_0, %c0_1] : memref<2x8x32xf32, #tpu.memory_space<vmem>>, vector<2x8x32xf32>
    %1 = vector.shape_cast %0 : vector<2x8x32xf32> to vector<16x32xf32>
    %c0_2 = arith.constant 0 : index
    %c0_3 = arith.constant 0 : index
    %c0_4 = arith.constant 0 : index
    %2 = vector.load %arg1[%c0_2, %c0_3, %c0_4] : memref<2x8x32xf32, #tpu.memory_space<vmem>>, vector<2x8x32xf32>
    %3 = vector.shape_cast %2 : vector<2x8x32xf32> to vector<16x32xf32>
    %c0_5 = arith.constant 0 : index
    %c0_6 = arith.constant 0 : index
    %c0_7 = arith.constant 0 : index
    %4 = vector.load %arg2[%c0_5, %c0_6, %c0_7] : memref<2x10x32xf32, #tpu.memory_space<vmem>>, vector<2x10x32xf32>
    %5 = vector.shape_cast %4 : vector<2x10x32xf32> to vector<20x32xf32>
    %c0_8 = arith.constant 0 : index
    %c0_9 = arith.constant 0 : index
    %c0_10 = arith.constant 0 : index
    %6 = vector.load %arg3[%c0_8, %c0_9, %c0_10] : memref<2x10x32xf32, #tpu.memory_space<vmem>>, vector<2x10x32xf32>
    %7 = vector.shape_cast %6 : vector<2x10x32xf32> to vector<20x32xf32>
    %c0_11 = arith.constant 0 : index
    %c0_12 = arith.constant 0 : index
    %8 = vector.load %arg16[%c0_11, %c0_12] : memref<6x32xf32, #tpu.memory_space<vmem>>, vector<6x32xf32>
    %9 = arith.addf %1, %3 : vector<16x32xf32>
    %c0_13 = arith.constant 0 : index
    %c0_14 = arith.constant 0 : index
    %10 = vector.load %arg4[%c0_13, %c0_14] : memref<32x96xf32, #tpu.memory_space<vmem>>, vector<32x96xf32>
    %c0_15 = arith.constant 0 : index
    %c0_16 = arith.constant 0 : index
    %11 = vector.load %arg5[%c0_15, %c0_16] : memref<1x96xf32, #tpu.memory_space<vmem>>, vector<1x96xf32>
    %c0_17 = arith.constant 0 : index
    %c0_18 = arith.constant 0 : index
    %12 = vector.load %arg6[%c0_17, %c0_18] : memref<32x32xf32, #tpu.memory_space<vmem>>, vector<32x32xf32>
    %c0_19 = arith.constant 0 : index
    %c0_20 = arith.constant 0 : index
    %13 = vector.load %arg7[%c0_19, %c0_20] : memref<1x32xf32, #tpu.memory_space<vmem>>, vector<1x32xf32>
    %14 = vector.extract_strided_slice %10 {offsets = [0, 0], sizes = [32, 64], strides = [1, 1]} : vector<32x96xf32> to vector<32x64xf32>
    %cst = arith.constant dense<0.000000e+00> : vector<16x64xf32>
    %15 = tpu.matmul %9, %14, %cst {dimension_numbers = #tpu.dot_dimension_numbers<[1], [0], [0], [1], [0, 0, 1, 1], [], []>} : vector<16x32xf32>, vector<32x64xf32>, vector<16x64xf32> -> vector<16x64xf32>
    %16 = vector.extract_strided_slice %11 {offsets = [0, 0], sizes = [1, 64], strides = [1, 1]} : vector<1x96xf32> to vector<1x64xf32>
    %17 = vector.broadcast %16 : vector<1x64xf32> to vector<16x64xf32>
    %18 = arith.addf %15, %17 : vector<16x64xf32>
    %19 = vector.extract_strided_slice %18 {offsets = [0, 0], sizes = [16, 32], strides = [1, 1]} : vector<16x64xf32> to vector<16x32xf32>
    %20 = vector.extract_strided_slice %18 {offsets = [0, 32], sizes = [16, 32], strides = [1, 1]} : vector<16x64xf32> to vector<16x32xf32>
    %21 = vector.extract_strided_slice %10 {offsets = [0, 64], sizes = [32, 32], strides = [1, 1]} : vector<32x96xf32> to vector<32x32xf32>
    %cst_21 = arith.constant dense<0.000000e+00> : vector<16x32xf32>
    %22 = tpu.matmul %1, %21, %cst_21 {dimension_numbers = #tpu.dot_dimension_numbers<[1], [0], [0], [1], [0, 0, 1, 1], [], []>} : vector<16x32xf32>, vector<32x32xf32>, vector<16x32xf32> -> vector<16x32xf32>
    %23 = vector.extract_strided_slice %11 {offsets = [0, 64], sizes = [1, 32], strides = [1, 1]} : vector<1x96xf32> to vector<1x32xf32>
    %24 = vector.broadcast %23 : vector<1x32xf32> to vector<16x32xf32>
    %25 = arith.addf %22, %24 : vector<16x32xf32>
    %26 = vector.shape_cast %19 : vector<16x32xf32> to vector<2x8x32xf32>
    %27 = vector.shape_cast %20 : vector<16x32xf32> to vector<2x8x32xf32>
    %28 = vector.shape_cast %25 : vector<16x32xf32> to vector<2x8x32xf32>
    %29 = vector.shape_cast %13 : vector<1x32xf32> to vector<1x32xf32>
    %30 = vector.broadcast %29 : vector<1x32xf32> to vector<16x32xf32>
    %31 = vector.extract_strided_slice %26 {offsets = [0, 0, 0], sizes = [2, 8, 8], strides = [1, 1, 1]} : vector<2x8x32xf32> to vector<2x8x8xf32>
    %32 = vector.extract_strided_slice %27 {offsets = [0, 0, 0], sizes = [2, 8, 8], strides = [1, 1, 1]} : vector<2x8x32xf32> to vector<2x8x8xf32>
    %33 = vector.extract_strided_slice %28 {offsets = [0, 0, 0], sizes = [2, 8, 8], strides = [1, 1, 1]} : vector<2x8x32xf32> to vector<2x8x8xf32>
    "tpu.trace_start"() <{level = 10 : i32, message = "nqd,nkd->nqk"}> : () -> ()
    %cst_22 = arith.constant dense<0.000000e+00> : vector<2x8x8xf32>
    %34 = tpu.matmul %31, %32, %cst_22 {dimension_numbers = #tpu.dot_dimension_numbers<[2], [2], [1], [1], [0, 0, 0, 1, 1, 1], [0], [0]>} : vector<2x8x8xf32>, vector<2x8x8xf32>, vector<2x8x8xf32> -> vector<2x8x8xf32>
    "tpu.trace_stop"() : () -> ()
    %cst_23 = arith.constant 0.353553385 : f32
    %35 = vector.broadcast %cst_23 : f32 to vector<2x8x8xf32>
    %36 = arith.mulf %34, %35 : vector<2x8x8xf32>
    %cst_24 = arith.constant dense<0xFF800000> : vector<2x8xf32>
    %37 = vector.multi_reduction <maximumf>, %36, %cst_24 [2] : vector<2x8x8xf32> to vector<2x8xf32>
    %38 = vector.shape_cast %37 : vector<2x8xf32> to vector<2x8x1xf32>
    %39 = vector.broadcast %38 : vector<2x8x1xf32> to vector<2x8x8xf32>
    %40 = arith.subf %36, %39 : vector<2x8x8xf32>
    %41 = math.exp %40 : vector<2x8x8xf32>
    %cst_25 = arith.constant dense<0.000000e+00> : vector<2x8xf32>
    %42 = vector.multi_reduction <add>, %41, %cst_25 [2] : vector<2x8x8xf32> to vector<2x8xf32>
    %43 = vector.shape_cast %42 : vector<2x8xf32> to vector<2x8x1xf32>
    %44 = tpu.reciprocal %43 {approx = true} : vector<2x8x1xf32> -> vector<2x8x1xf32>
    %45 = vector.broadcast %44 : vector<2x8x1xf32> to vector<2x8x8xf32>
    %46 = arith.mulf %41, %45 : vector<2x8x8xf32>
    "tpu.trace_start"() <{level = 10 : i32, message = "nqk,nkd->nqd"}> : () -> ()
    %cst_26 = arith.constant dense<0.000000e+00> : vector<2x8x8xf32>
    %47 = tpu.matmul %46, %33, %cst_26 {dimension_numbers = #tpu.dot_dimension_numbers<[2], [1], [1], [2], [0, 0, 0, 1, 1, 2], [0], [0]>} : vector<2x8x8xf32>, vector<2x8x8xf32>, vector<2x8x8xf32> -> vector<2x8x8xf32>
    "tpu.trace_stop"() : () -> ()
    %48 = vector.shape_cast %47 : vector<2x8x8xf32> to vector<16x8xf32>
    %49 = vector.extract_strided_slice %12 {offsets = [0, 0], sizes = [8, 32], strides = [1, 1]} : vector<32x32xf32> to vector<8x32xf32>
    %cst_27 = arith.constant dense<0.000000e+00> : vector<16x32xf32>
    %50 = tpu.matmul %48, %49, %cst_27 {dimension_numbers = #tpu.dot_dimension_numbers<[1], [0], [0], [1], [0, 0, 1, 1], [], []>} : vector<16x8xf32>, vector<8x32xf32>, vector<16x32xf32> -> vector<16x32xf32>
    %51 = arith.addf %30, %50 : vector<16x32xf32>
    %52 = vector.extract_strided_slice %26 {offsets = [0, 0, 8], sizes = [2, 8, 8], strides = [1, 1, 1]} : vector<2x8x32xf32> to vector<2x8x8xf32>
    %53 = vector.extract_strided_slice %27 {offsets = [0, 0, 8], sizes = [2, 8, 8], strides = [1, 1, 1]} : vector<2x8x32xf32> to vector<2x8x8xf32>
    %54 = vector.extract_strided_slice %28 {offsets = [0, 0, 8], sizes = [2, 8, 8], strides = [1, 1, 1]} : vector<2x8x32xf32> to vector<2x8x8xf32>
    "tpu.trace_start"() <{level = 10 : i32, message = "nqd,nkd->nqk"}> : () -> ()
    %cst_28 = arith.constant dense<0.000000e+00> : vector<2x8x8xf32>
    %55 = tpu.matmul %52, %53, %cst_28 {dimension_numbers = #tpu.dot_dimension_numbers<[2], [2], [1], [1], [0, 0, 0, 1, 1, 1], [0], [0]>} : vector<2x8x8xf32>, vector<2x8x8xf32>, vector<2x8x8xf32> -> vector<2x8x8xf32>
    "tpu.trace_stop"() : () -> ()
    %cst_29 = arith.constant 0.353553385 : f32
    %56 = vector.broadcast %cst_29 : f32 to vector<2x8x8xf32>
    %57 = arith.mulf %55, %56 : vector<2x8x8xf32>
    %cst_30 = arith.constant dense<0xFF800000> : vector<2x8xf32>
    %58 = vector.multi_reduction <maximumf>, %57, %cst_30 [2] : vector<2x8x8xf32> to vector<2x8xf32>
    %59 = vector.shape_cast %58 : vector<2x8xf32> to vector<2x8x1xf32>
    %60 = vector.broadcast %59 : vector<2x8x1xf32> to vector<2x8x8xf32>
    %61 = arith.subf %57, %60 : vector<2x8x8xf32>
    %62 = math.exp %61 : vector<2x8x8xf32>
    %cst_31 = arith.constant dense<0.000000e+00> : vector<2x8xf32>
    %63 = vector.multi_reduction <add>, %62, %cst_31 [2] : vector<2x8x8xf32> to vector<2x8xf32>
    %64 = vector.shape_cast %63 : vector<2x8xf32> to vector<2x8x1xf32>
    %65 = tpu.reciprocal %64 {approx = true} : vector<2x8x1xf32> -> vector<2x8x1xf32>
    %66 = vector.broadcast %65 : vector<2x8x1xf32> to vector<2x8x8xf32>
    %67 = arith.mulf %62, %66 : vector<2x8x8xf32>
    "tpu.trace_start"() <{level = 10 : i32, message = "nqk,nkd->nqd"}> : () -> ()
    %cst_32 = arith.constant dense<0.000000e+00> : vector<2x8x8xf32>
    %68 = tpu.matmul %67, %54, %cst_32 {dimension_numbers = #tpu.dot_dimension_numbers<[2], [1], [1], [2], [0, 0, 0, 1, 1, 2], [0], [0]>} : vector<2x8x8xf32>, vector<2x8x8xf32>, vector<2x8x8xf32> -> vector<2x8x8xf32>
    "tpu.trace_stop"() : () -> ()
    %69 = vector.shape_cast %68 : vector<2x8x8xf32> to vector<16x8xf32>
    %70 = vector.extract_strided_slice %12 {offsets = [8, 0], sizes = [8, 32], strides = [1, 1]} : vector<32x32xf32> to vector<8x32xf32>
    %cst_33 = arith.constant dense<0.000000e+00> : vector<16x32xf32>
    %71 = tpu.matmul %69, %70, %cst_33 {dimension_numbers = #tpu.dot_dimension_numbers<[1], [0], [0], [1], [0, 0, 1, 1], [], []>} : vector<16x8xf32>, vector<8x32xf32>, vector<16x32xf32> -> vector<16x32xf32>
    %72 = arith.addf %51, %71 : vector<16x32xf32>
    %73 = vector.extract_strided_slice %26 {offsets = [0, 0, 16], sizes = [2, 8, 8], strides = [1, 1, 1]} : vector<2x8x32xf32> to vector<2x8x8xf32>
    %74 = vector.extract_strided_slice %27 {offsets = [0, 0, 16], sizes = [2, 8, 8], strides = [1, 1, 1]} : vector<2x8x32xf32> to vector<2x8x8xf32>
    %75 = vector.extract_strided_slice %28 {offsets = [0, 0, 16], sizes = [2, 8, 8], strides = [1, 1, 1]} : vector<2x8x32xf32> to vector<2x8x8xf32>
    "tpu.trace_start"() <{level = 10 : i32, message = "nqd,nkd->nqk"}> : () -> ()
    %cst_34 = arith.constant dense<0.000000e+00> : vector<2x8x8xf32>
    %76 = tpu.matmul %73, %74, %cst_34 {dimension_numbers = #tpu.dot_dimension_numbers<[2], [2], [1], [1], [0, 0, 0, 1, 1, 1], [0], [0]>} : vector<2x8x8xf32>, vector<2x8x8xf32>, vector<2x8x8xf32> -> vector<2x8x8xf32>
    "tpu.trace_stop"() : () -> ()
    %cst_35 = arith.constant 0.353553385 : f32
    %77 = vector.broadcast %cst_35 : f32 to vector<2x8x8xf32>
    %78 = arith.mulf %76, %77 : vector<2x8x8xf32>
    %cst_36 = arith.constant dense<0xFF800000> : vector<2x8xf32>
    %79 = vector.multi_reduction <maximumf>, %78, %cst_36 [2] : vector<2x8x8xf32> to vector<2x8xf32>
    %80 = vector.shape_cast %79 : vector<2x8xf32> to vector<2x8x1xf32>
    %81 = vector.broadcast %80 : vector<2x8x1xf32> to vector<2x8x8xf32>
    %82 = arith.subf %78, %81 : vector<2x8x8xf32>
    %83 = math.exp %82 : vector<2x8x8xf32>
    %cst_37 = arith.constant dense<0.000000e+00> : vector<2x8xf32>
    %84 = vector.multi_reduction <add>, %83, %cst_37 [2] : vector<2x8x8xf32> to vector<2x8xf32>
    %85 = vector.shape_cast %84 : vector<2x8xf32> to vector<2x8x1xf32>
    %86 = tpu.reciprocal %85 {approx = true} : vector<2x8x1xf32> -> vector<2x8x1xf32>
    %87 = vector.broadcast %86 : vector<2x8x1xf32> to vector<2x8x8xf32>
    %88 = arith.mulf %83, %87 : vector<2x8x8xf32>
    "tpu.trace_start"() <{level = 10 : i32, message = "nqk,nkd->nqd"}> : () -> ()
    %cst_38 = arith.constant dense<0.000000e+00> : vector<2x8x8xf32>
    %89 = tpu.matmul %88, %75, %cst_38 {dimension_numbers = #tpu.dot_dimension_numbers<[2], [1], [1], [2], [0, 0, 0, 1, 1, 2], [0], [0]>} : vector<2x8x8xf32>, vector<2x8x8xf32>, vector<2x8x8xf32> -> vector<2x8x8xf32>
    "tpu.trace_stop"() : () -> ()
    %90 = vector.shape_cast %89 : vector<2x8x8xf32> to vector<16x8xf32>
    %91 = vector.extract_strided_slice %12 {offsets = [16, 0], sizes = [8, 32], strides = [1, 1]} : vector<32x32xf32> to vector<8x32xf32>
    %cst_39 = arith.constant dense<0.000000e+00> : vector<16x32xf32>
    %92 = tpu.matmul %90, %91, %cst_39 {dimension_numbers = #tpu.dot_dimension_numbers<[1], [0], [0], [1], [0, 0, 1, 1], [], []>} : vector<16x8xf32>, vector<8x32xf32>, vector<16x32xf32> -> vector<16x32xf32>
    %93 = arith.addf %72, %92 : vector<16x32xf32>
    %94 = vector.extract_strided_slice %26 {offsets = [0, 0, 24], sizes = [2, 8, 8], strides = [1, 1, 1]} : vector<2x8x32xf32> to vector<2x8x8xf32>
    %95 = vector.extract_strided_slice %27 {offsets = [0, 0, 24], sizes = [2, 8, 8], strides = [1, 1, 1]} : vector<2x8x32xf32> to vector<2x8x8xf32>
    %96 = vector.extract_strided_slice %28 {offsets = [0, 0, 24], sizes = [2, 8, 8], strides = [1, 1, 1]} : vector<2x8x32xf32> to vector<2x8x8xf32>
    "tpu.trace_start"() <{level = 10 : i32, message = "nqd,nkd->nqk"}> : () -> ()
    %cst_40 = arith.constant dense<0.000000e+00> : vector<2x8x8xf32>
    %97 = tpu.matmul %94, %95, %cst_40 {dimension_numbers = #tpu.dot_dimension_numbers<[2], [2], [1], [1], [0, 0, 0, 1, 1, 1], [0], [0]>} : vector<2x8x8xf32>, vector<2x8x8xf32>, vector<2x8x8xf32> -> vector<2x8x8xf32>
    "tpu.trace_stop"() : () -> ()
    %cst_41 = arith.constant 0.353553385 : f32
    %98 = vector.broadcast %cst_41 : f32 to vector<2x8x8xf32>
    %99 = arith.mulf %97, %98 : vector<2x8x8xf32>
    %cst_42 = arith.constant dense<0xFF800000> : vector<2x8xf32>
    %100 = vector.multi_reduction <maximumf>, %99, %cst_42 [2] : vector<2x8x8xf32> to vector<2x8xf32>
    %101 = vector.shape_cast %100 : vector<2x8xf32> to vector<2x8x1xf32>
    %102 = vector.broadcast %101 : vector<2x8x1xf32> to vector<2x8x8xf32>
    %103 = arith.subf %99, %102 : vector<2x8x8xf32>
    %104 = math.exp %103 : vector<2x8x8xf32>
    %cst_43 = arith.constant dense<0.000000e+00> : vector<2x8xf32>
    %105 = vector.multi_reduction <add>, %104, %cst_43 [2] : vector<2x8x8xf32> to vector<2x8xf32>
    %106 = vector.shape_cast %105 : vector<2x8xf32> to vector<2x8x1xf32>
    %107 = tpu.reciprocal %106 {approx = true} : vector<2x8x1xf32> -> vector<2x8x1xf32>
    %108 = vector.broadcast %107 : vector<2x8x1xf32> to vector<2x8x8xf32>
    %109 = arith.mulf %104, %108 : vector<2x8x8xf32>
    "tpu.trace_start"() <{level = 10 : i32, message = "nqk,nkd->nqd"}> : () -> ()
    %cst_44 = arith.constant dense<0.000000e+00> : vector<2x8x8xf32>
    %110 = tpu.matmul %109, %96, %cst_44 {dimension_numbers = #tpu.dot_dimension_numbers<[2], [1], [1], [2], [0, 0, 0, 1, 1, 2], [0], [0]>} : vector<2x8x8xf32>, vector<2x8x8xf32>, vector<2x8x8xf32> -> vector<2x8x8xf32>
    "tpu.trace_stop"() : () -> ()
    %111 = vector.shape_cast %110 : vector<2x8x8xf32> to vector<16x8xf32>
    %112 = vector.extract_strided_slice %12 {offsets = [24, 0], sizes = [8, 32], strides = [1, 1]} : vector<32x32xf32> to vector<8x32xf32>
    %cst_45 = arith.constant dense<0.000000e+00> : vector<16x32xf32>
    %113 = tpu.matmul %111, %112, %cst_45 {dimension_numbers = #tpu.dot_dimension_numbers<[1], [0], [0], [1], [0, 0, 1, 1], [], []>} : vector<16x8xf32>, vector<8x32xf32>, vector<16x32xf32> -> vector<16x32xf32>
    %114 = arith.addf %93, %113 : vector<16x32xf32>
    %115 = arith.addf %1, %114 : vector<16x32xf32>
    %116 = vector.extract_strided_slice %8 {offsets = [0, 0], sizes = [1, 32], strides = [1, 1]} : vector<6x32xf32> to vector<1x32xf32>
    %117 = vector.extract_strided_slice %8 {offsets = [1, 0], sizes = [1, 32], strides = [1, 1]} : vector<6x32xf32> to vector<1x32xf32>
    %cst_46 = arith.constant dense<0.000000e+00> : vector<16xf32>
    %118 = vector.multi_reduction <add>, %115, %cst_46 [1] : vector<16x32xf32> to vector<16xf32>
    %119 = vector.shape_cast %118 : vector<16xf32> to vector<16x1xf32>
    %cst_47 = arith.constant 3.200000e+01 : f32
    %120 = vector.broadcast %cst_47 : f32 to vector<16x1xf32>
    %121 = arith.divf %119, %120 : vector<16x1xf32>
    %122 = vector.broadcast %121 : vector<16x1xf32> to vector<16x32xf32>
    %123 = arith.subf %115, %122 : vector<16x32xf32>
    %124 = arith.mulf %123, %123 : vector<16x32xf32>
    %cst_48 = arith.constant dense<0.000000e+00> : vector<16xf32>
    %125 = vector.multi_reduction <add>, %124, %cst_48 [1] : vector<16x32xf32> to vector<16xf32>
    %126 = vector.shape_cast %125 : vector<16xf32> to vector<16x1xf32>
    %cst_49 = arith.constant 3.200000e+01 : f32
    %127 = vector.broadcast %cst_49 : f32 to vector<16x1xf32>
    %128 = arith.divf %126, %127 : vector<16x1xf32>
    %cst_50 = arith.constant 9.99999974E-6 : f32
    %129 = vector.broadcast %cst_50 : f32 to vector<16x1xf32>
    %130 = arith.addf %128, %129 : vector<16x1xf32>
    %131 = math.rsqrt %130 : vector<16x1xf32>
    %132 = vector.broadcast %131 : vector<16x1xf32> to vector<16x32xf32>
    %133 = arith.mulf %123, %132 : vector<16x32xf32>
    %134 = vector.broadcast %116 : vector<1x32xf32> to vector<16x32xf32>
    %135 = arith.mulf %133, %134 : vector<16x32xf32>
    %136 = vector.broadcast %117 : vector<1x32xf32> to vector<16x32xf32>
    %137 = arith.addf %135, %136 : vector<16x32xf32>
    %138 = arith.addf %137, %3 : vector<16x32xf32>
    %139 = arith.addf %5, %7 : vector<20x32xf32>
    %c0_51 = arith.constant 0 : index
    %c0_52 = arith.constant 0 : index
    %140 = vector.load %arg8[%c0_51, %c0_52] : memref<32x96xf32, #tpu.memory_space<vmem>>, vector<32x96xf32>
    %c0_53 = arith.constant 0 : index
    %c0_54 = arith.constant 0 : index
    %141 = vector.load %arg9[%c0_53, %c0_54] : memref<1x96xf32, #tpu.memory_space<vmem>>, vector<1x96xf32>
    %c0_55 = arith.constant 0 : index
    %c0_56 = arith.constant 0 : index
    %142 = vector.load %arg10[%c0_55, %c0_56] : memref<32x32xf32, #tpu.memory_space<vmem>>, vector<32x32xf32>
    %c0_57 = arith.constant 0 : index
    %c0_58 = arith.constant 0 : index
    %143 = vector.load %arg11[%c0_57, %c0_58] : memref<1x32xf32, #tpu.memory_space<vmem>>, vector<1x32xf32>
    %144 = vector.extract_strided_slice %140 {offsets = [0, 0], sizes = [32, 32], strides = [1, 1]} : vector<32x96xf32> to vector<32x32xf32>
    %cst_59 = arith.constant dense<0.000000e+00> : vector<16x32xf32>
    %145 = tpu.matmul %138, %144, %cst_59 {dimension_numbers = #tpu.dot_dimension_numbers<[1], [0], [0], [1], [0, 0, 1, 1], [], []>} : vector<16x32xf32>, vector<32x32xf32>, vector<16x32xf32> -> vector<16x32xf32>
    %146 = vector.extract_strided_slice %141 {offsets = [0, 0], sizes = [1, 32], strides = [1, 1]} : vector<1x96xf32> to vector<1x32xf32>
    %147 = vector.broadcast %146 : vector<1x32xf32> to vector<16x32xf32>
    %148 = arith.addf %145, %147 : vector<16x32xf32>
    %149 = vector.extract_strided_slice %140 {offsets = [0, 32], sizes = [32, 32], strides = [1, 1]} : vector<32x96xf32> to vector<32x32xf32>
    %cst_60 = arith.constant dense<0.000000e+00> : vector<20x32xf32>
    %150 = tpu.matmul %139, %149, %cst_60 {dimension_numbers = #tpu.dot_dimension_numbers<[1], [0], [0], [1], [0, 0, 1, 1], [], []>} : vector<20x32xf32>, vector<32x32xf32>, vector<20x32xf32> -> vector<20x32xf32>
    %151 = vector.extract_strided_slice %141 {offsets = [0, 32], sizes = [1, 32], strides = [1, 1]} : vector<1x96xf32> to vector<1x32xf32>
    %152 = vector.broadcast %151 : vector<1x32xf32> to vector<20x32xf32>
    %153 = arith.addf %150, %152 : vector<20x32xf32>
    %154 = vector.extract_strided_slice %140 {offsets = [0, 64], sizes = [32, 32], strides = [1, 1]} : vector<32x96xf32> to vector<32x32xf32>
    %cst_61 = arith.constant dense<0.000000e+00> : vector<20x32xf32>
    %155 = tpu.matmul %5, %154, %cst_61 {dimension_numbers = #tpu.dot_dimension_numbers<[1], [0], [0], [1], [0, 0, 1, 1], [], []>} : vector<20x32xf32>, vector<32x32xf32>, vector<20x32xf32> -> vector<20x32xf32>
    %156 = vector.extract_strided_slice %141 {offsets = [0, 64], sizes = [1, 32], strides = [1, 1]} : vector<1x96xf32> to vector<1x32xf32>
    %157 = vector.broadcast %156 : vector<1x32xf32> to vector<20x32xf32>
    %158 = arith.addf %155, %157 : vector<20x32xf32>
    %159 = vector.shape_cast %148 : vector<16x32xf32> to vector<2x8x32xf32>
    %160 = vector.shape_cast %153 : vector<20x32xf32> to vector<2x10x32xf32>
    %161 = vector.shape_cast %158 : vector<20x32xf32> to vector<2x10x32xf32>
    %162 = vector.shape_cast %143 : vector<1x32xf32> to vector<1x32xf32>
    %163 = vector.broadcast %162 : vector<1x32xf32> to vector<16x32xf32>
    %164 = vector.extract_strided_slice %159 {offsets = [0, 0, 0], sizes = [2, 8, 8], strides = [1, 1, 1]} : vector<2x8x32xf32> to vector<2x8x8xf32>
    %165 = vector.extract_strided_slice %160 {offsets = [0, 0, 0], sizes = [2, 10, 8], strides = [1, 1, 1]} : vector<2x10x32xf32> to vector<2x10x8xf32>
    %166 = vector.extract_strided_slice %161 {offsets = [0, 0, 0], sizes = [2, 10, 8], strides = [1, 1, 1]} : vector<2x10x32xf32> to vector<2x10x8xf32>
    "tpu.trace_start"() <{level = 10 : i32, message = "nqd,nkd->nqk"}> : () -> ()
    %cst_62 = arith.constant dense<0.000000e+00> : vector<2x8x10xf32>
    %167 = tpu.matmul %164, %165, %cst_62 {dimension_numbers = #tpu.dot_dimension_numbers<[2], [2], [1], [1], [0, 0, 0, 1, 1, 1], [0], [0]>} : vector<2x8x8xf32>, vector<2x10x8xf32>, vector<2x8x10xf32> -> vector<2x8x10xf32>
    "tpu.trace_stop"() : () -> ()
    %cst_63 = arith.constant 0.353553385 : f32
    %168 = vector.broadcast %cst_63 : f32 to vector<2x8x10xf32>
    %169 = arith.mulf %167, %168 : vector<2x8x10xf32>
    %cst_64 = arith.constant dense<0xFF800000> : vector<2x8xf32>
    %170 = vector.multi_reduction <maximumf>, %169, %cst_64 [2] : vector<2x8x10xf32> to vector<2x8xf32>
    %171 = vector.shape_cast %170 : vector<2x8xf32> to vector<2x8x1xf32>
    %172 = vector.broadcast %171 : vector<2x8x1xf32> to vector<2x8x10xf32>
    %173 = arith.subf %169, %172 : vector<2x8x10xf32>
    %174 = math.exp %173 : vector<2x8x10xf32>
    %cst_65 = arith.constant dense<0.000000e+00> : vector<2x8xf32>
    %175 = vector.multi_reduction <add>, %174, %cst_65 [2] : vector<2x8x10xf32> to vector<2x8xf32>
    %176 = vector.shape_cast %175 : vector<2x8xf32> to vector<2x8x1xf32>
    %177 = tpu.reciprocal %176 {approx = true} : vector<2x8x1xf32> -> vector<2x8x1xf32>
    %178 = vector.broadcast %177 : vector<2x8x1xf32> to vector<2x8x10xf32>
    %179 = arith.mulf %174, %178 : vector<2x8x10xf32>
    "tpu.trace_start"() <{level = 10 : i32, message = "nqk,nkd->nqd"}> : () -> ()
    %cst_66 = arith.constant dense<0.000000e+00> : vector<2x8x8xf32>
    %180 = tpu.matmul %179, %166, %cst_66 {dimension_numbers = #tpu.dot_dimension_numbers<[2], [1], [1], [2], [0, 0, 0, 1, 1, 2], [0], [0]>} : vector<2x8x10xf32>, vector<2x10x8xf32>, vector<2x8x8xf32> -> vector<2x8x8xf32>
    "tpu.trace_stop"() : () -> ()
    %181 = vector.shape_cast %180 : vector<2x8x8xf32> to vector<16x8xf32>
    %182 = vector.extract_strided_slice %142 {offsets = [0, 0], sizes = [8, 32], strides = [1, 1]} : vector<32x32xf32> to vector<8x32xf32>
    %cst_67 = arith.constant dense<0.000000e+00> : vector<16x32xf32>
    %183 = tpu.matmul %181, %182, %cst_67 {dimension_numbers = #tpu.dot_dimension_numbers<[1], [0], [0], [1], [0, 0, 1, 1], [], []>} : vector<16x8xf32>, vector<8x32xf32>, vector<16x32xf32> -> vector<16x32xf32>
    %184 = arith.addf %163, %183 : vector<16x32xf32>
    %185 = vector.extract_strided_slice %159 {offsets = [0, 0, 8], sizes = [2, 8, 8], strides = [1, 1, 1]} : vector<2x8x32xf32> to vector<2x8x8xf32>
    %186 = vector.extract_strided_slice %160 {offsets = [0, 0, 8], sizes = [2, 10, 8], strides = [1, 1, 1]} : vector<2x10x32xf32> to vector<2x10x8xf32>
    %187 = vector.extract_strided_slice %161 {offsets = [0, 0, 8], sizes = [2, 10, 8], strides = [1, 1, 1]} : vector<2x10x32xf32> to vector<2x10x8xf32>
    "tpu.trace_start"() <{level = 10 : i32, message = "nqd,nkd->nqk"}> : () -> ()
    %cst_68 = arith.constant dense<0.000000e+00> : vector<2x8x10xf32>
    %188 = tpu.matmul %185, %186, %cst_68 {dimension_numbers = #tpu.dot_dimension_numbers<[2], [2], [1], [1], [0, 0, 0, 1, 1, 1], [0], [0]>} : vector<2x8x8xf32>, vector<2x10x8xf32>, vector<2x8x10xf32> -> vector<2x8x10xf32>
    "tpu.trace_stop"() : () -> ()
    %cst_69 = arith.constant 0.353553385 : f32
    %189 = vector.broadcast %cst_69 : f32 to vector<2x8x10xf32>
    %190 = arith.mulf %188, %189 : vector<2x8x10xf32>
    %cst_70 = arith.constant dense<0xFF800000> : vector<2x8xf32>
    %191 = vector.multi_reduction <maximumf>, %190, %cst_70 [2] : vector<2x8x10xf32> to vector<2x8xf32>
    %192 = vector.shape_cast %191 : vector<2x8xf32> to vector<2x8x1xf32>
    %193 = vector.broadcast %192 : vector<2x8x1xf32> to vector<2x8x10xf32>
    %194 = arith.subf %190, %193 : vector<2x8x10xf32>
    %195 = math.exp %194 : vector<2x8x10xf32>
    %cst_71 = arith.constant dense<0.000000e+00> : vector<2x8xf32>
    %196 = vector.multi_reduction <add>, %195, %cst_71 [2] : vector<2x8x10xf32> to vector<2x8xf32>
    %197 = vector.shape_cast %196 : vector<2x8xf32> to vector<2x8x1xf32>
    %198 = tpu.reciprocal %197 {approx = true} : vector<2x8x1xf32> -> vector<2x8x1xf32>
    %199 = vector.broadcast %198 : vector<2x8x1xf32> to vector<2x8x10xf32>
    %200 = arith.mulf %195, %199 : vector<2x8x10xf32>
    "tpu.trace_start"() <{level = 10 : i32, message = "nqk,nkd->nqd"}> : () -> ()
    %cst_72 = arith.constant dense<0.000000e+00> : vector<2x8x8xf32>
    %201 = tpu.matmul %200, %187, %cst_72 {dimension_numbers = #tpu.dot_dimension_numbers<[2], [1], [1], [2], [0, 0, 0, 1, 1, 2], [0], [0]>} : vector<2x8x10xf32>, vector<2x10x8xf32>, vector<2x8x8xf32> -> vector<2x8x8xf32>
    "tpu.trace_stop"() : () -> ()
    %202 = vector.shape_cast %201 : vector<2x8x8xf32> to vector<16x8xf32>
    %203 = vector.extract_strided_slice %142 {offsets = [8, 0], sizes = [8, 32], strides = [1, 1]} : vector<32x32xf32> to vector<8x32xf32>
    %cst_73 = arith.constant dense<0.000000e+00> : vector<16x32xf32>
    %204 = tpu.matmul %202, %203, %cst_73 {dimension_numbers = #tpu.dot_dimension_numbers<[1], [0], [0], [1], [0, 0, 1, 1], [], []>} : vector<16x8xf32>, vector<8x32xf32>, vector<16x32xf32> -> vector<16x32xf32>
    %205 = arith.addf %184, %204 : vector<16x32xf32>
    %206 = vector.extract_strided_slice %159 {offsets = [0, 0, 16], sizes = [2, 8, 8], strides = [1, 1, 1]} : vector<2x8x32xf32> to vector<2x8x8xf32>
    %207 = vector.extract_strided_slice %160 {offsets = [0, 0, 16], sizes = [2, 10, 8], strides = [1, 1, 1]} : vector<2x10x32xf32> to vector<2x10x8xf32>
    %208 = vector.extract_strided_slice %161 {offsets = [0, 0, 16], sizes = [2, 10, 8], strides = [1, 1, 1]} : vector<2x10x32xf32> to vector<2x10x8xf32>
    "tpu.trace_start"() <{level = 10 : i32, message = "nqd,nkd->nqk"}> : () -> ()
    %cst_74 = arith.constant dense<0.000000e+00> : vector<2x8x10xf32>
    %209 = tpu.matmul %206, %207, %cst_74 {dimension_numbers = #tpu.dot_dimension_numbers<[2], [2], [1], [1], [0, 0, 0, 1, 1, 1], [0], [0]>} : vector<2x8x8xf32>, vector<2x10x8xf32>, vector<2x8x10xf32> -> vector<2x8x10xf32>
    "tpu.trace_stop"() : () -> ()
    %cst_75 = arith.constant 0.353553385 : f32
    %210 = vector.broadcast %cst_75 : f32 to vector<2x8x10xf32>
    %211 = arith.mulf %209, %210 : vector<2x8x10xf32>
    %cst_76 = arith.constant dense<0xFF800000> : vector<2x8xf32>
    %212 = vector.multi_reduction <maximumf>, %211, %cst_76 [2] : vector<2x8x10xf32> to vector<2x8xf32>
    %213 = vector.shape_cast %212 : vector<2x8xf32> to vector<2x8x1xf32>
    %214 = vector.broadcast %213 : vector<2x8x1xf32> to vector<2x8x10xf32>
    %215 = arith.subf %211, %214 : vector<2x8x10xf32>
    %216 = math.exp %215 : vector<2x8x10xf32>
    %cst_77 = arith.constant dense<0.000000e+00> : vector<2x8xf32>
    %217 = vector.multi_reduction <add>, %216, %cst_77 [2] : vector<2x8x10xf32> to vector<2x8xf32>
    %218 = vector.shape_cast %217 : vector<2x8xf32> to vector<2x8x1xf32>
    %219 = tpu.reciprocal %218 {approx = true} : vector<2x8x1xf32> -> vector<2x8x1xf32>
    %220 = vector.broadcast %219 : vector<2x8x1xf32> to vector<2x8x10xf32>
    %221 = arith.mulf %216, %220 : vector<2x8x10xf32>
    "tpu.trace_start"() <{level = 10 : i32, message = "nqk,nkd->nqd"}> : () -> ()
    %cst_78 = arith.constant dense<0.000000e+00> : vector<2x8x8xf32>
    %222 = tpu.matmul %221, %208, %cst_78 {dimension_numbers = #tpu.dot_dimension_numbers<[2], [1], [1], [2], [0, 0, 0, 1, 1, 2], [0], [0]>} : vector<2x8x10xf32>, vector<2x10x8xf32>, vector<2x8x8xf32> -> vector<2x8x8xf32>
    "tpu.trace_stop"() : () -> ()
    %223 = vector.shape_cast %222 : vector<2x8x8xf32> to vector<16x8xf32>
    %224 = vector.extract_strided_slice %142 {offsets = [16, 0], sizes = [8, 32], strides = [1, 1]} : vector<32x32xf32> to vector<8x32xf32>
    %cst_79 = arith.constant dense<0.000000e+00> : vector<16x32xf32>
    %225 = tpu.matmul %223, %224, %cst_79 {dimension_numbers = #tpu.dot_dimension_numbers<[1], [0], [0], [1], [0, 0, 1, 1], [], []>} : vector<16x8xf32>, vector<8x32xf32>, vector<16x32xf32> -> vector<16x32xf32>
    %226 = arith.addf %205, %225 : vector<16x32xf32>
    %227 = vector.extract_strided_slice %159 {offsets = [0, 0, 24], sizes = [2, 8, 8], strides = [1, 1, 1]} : vector<2x8x32xf32> to vector<2x8x8xf32>
    %228 = vector.extract_strided_slice %160 {offsets = [0, 0, 24], sizes = [2, 10, 8], strides = [1, 1, 1]} : vector<2x10x32xf32> to vector<2x10x8xf32>
    %229 = vector.extract_strided_slice %161 {offsets = [0, 0, 24], sizes = [2, 10, 8], strides = [1, 1, 1]} : vector<2x10x32xf32> to vector<2x10x8xf32>
    "tpu.trace_start"() <{level = 10 : i32, message = "nqd,nkd->nqk"}> : () -> ()
    %cst_80 = arith.constant dense<0.000000e+00> : vector<2x8x10xf32>
    %230 = tpu.matmul %227, %228, %cst_80 {dimension_numbers = #tpu.dot_dimension_numbers<[2], [2], [1], [1], [0, 0, 0, 1, 1, 1], [0], [0]>} : vector<2x8x8xf32>, vector<2x10x8xf32>, vector<2x8x10xf32> -> vector<2x8x10xf32>
    "tpu.trace_stop"() : () -> ()
    %cst_81 = arith.constant 0.353553385 : f32
    %231 = vector.broadcast %cst_81 : f32 to vector<2x8x10xf32>
    %232 = arith.mulf %230, %231 : vector<2x8x10xf32>
    %cst_82 = arith.constant dense<0xFF800000> : vector<2x8xf32>
    %233 = vector.multi_reduction <maximumf>, %232, %cst_82 [2] : vector<2x8x10xf32> to vector<2x8xf32>
    %234 = vector.shape_cast %233 : vector<2x8xf32> to vector<2x8x1xf32>
    %235 = vector.broadcast %234 : vector<2x8x1xf32> to vector<2x8x10xf32>
    %236 = arith.subf %232, %235 : vector<2x8x10xf32>
    %237 = math.exp %236 : vector<2x8x10xf32>
    %cst_83 = arith.constant dense<0.000000e+00> : vector<2x8xf32>
    %238 = vector.multi_reduction <add>, %237, %cst_83 [2] : vector<2x8x10xf32> to vector<2x8xf32>
    %239 = vector.shape_cast %238 : vector<2x8xf32> to vector<2x8x1xf32>
    %240 = tpu.reciprocal %239 {approx = true} : vector<2x8x1xf32> -> vector<2x8x1xf32>
    %241 = vector.broadcast %240 : vector<2x8x1xf32> to vector<2x8x10xf32>
    %242 = arith.mulf %237, %241 : vector<2x8x10xf32>
    "tpu.trace_start"() <{level = 10 : i32, message = "nqk,nkd->nqd"}> : () -> ()
    %cst_84 = arith.constant dense<0.000000e+00> : vector<2x8x8xf32>
    %243 = tpu.matmul %242, %229, %cst_84 {dimension_numbers = #tpu.dot_dimension_numbers<[2], [1], [1], [2], [0, 0, 0, 1, 1, 2], [0], [0]>} : vector<2x8x10xf32>, vector<2x10x8xf32>, vector<2x8x8xf32> -> vector<2x8x8xf32>
    "tpu.trace_stop"() : () -> ()
    %244 = vector.shape_cast %243 : vector<2x8x8xf32> to vector<16x8xf32>
    %245 = vector.extract_strided_slice %142 {offsets = [24, 0], sizes = [8, 32], strides = [1, 1]} : vector<32x32xf32> to vector<8x32xf32>
    %cst_85 = arith.constant dense<0.000000e+00> : vector<16x32xf32>
    %246 = tpu.matmul %244, %245, %cst_85 {dimension_numbers = #tpu.dot_dimension_numbers<[1], [0], [0], [1], [0, 0, 1, 1], [], []>} : vector<16x8xf32>, vector<8x32xf32>, vector<16x32xf32> -> vector<16x32xf32>
    %247 = arith.addf %226, %246 : vector<16x32xf32>
    %248 = arith.addf %137, %247 : vector<16x32xf32>
    %249 = vector.extract_strided_slice %8 {offsets = [2, 0], sizes = [1, 32], strides = [1, 1]} : vector<6x32xf32> to vector<1x32xf32>
    %250 = vector.extract_strided_slice %8 {offsets = [3, 0], sizes = [1, 32], strides = [1, 1]} : vector<6x32xf32> to vector<1x32xf32>
    %cst_86 = arith.constant dense<0.000000e+00> : vector<16xf32>
    %251 = vector.multi_reduction <add>, %248, %cst_86 [1] : vector<16x32xf32> to vector<16xf32>
    %252 = vector.shape_cast %251 : vector<16xf32> to vector<16x1xf32>
    %cst_87 = arith.constant 3.200000e+01 : f32
    %253 = vector.broadcast %cst_87 : f32 to vector<16x1xf32>
    %254 = arith.divf %252, %253 : vector<16x1xf32>
    %255 = vector.broadcast %254 : vector<16x1xf32> to vector<16x32xf32>
    %256 = arith.subf %248, %255 : vector<16x32xf32>
    %257 = arith.mulf %256, %256 : vector<16x32xf32>
    %cst_88 = arith.constant dense<0.000000e+00> : vector<16xf32>
    %258 = vector.multi_reduction <add>, %257, %cst_88 [1] : vector<16x32xf32> to vector<16xf32>
    %259 = vector.shape_cast %258 : vector<16xf32> to vector<16x1xf32>
    %cst_89 = arith.constant 3.200000e+01 : f32
    %260 = vector.broadcast %cst_89 : f32 to vector<16x1xf32>
    %261 = arith.divf %259, %260 : vector<16x1xf32>
    %cst_90 = arith.constant 9.99999974E-6 : f32
    %262 = vector.broadcast %cst_90 : f32 to vector<16x1xf32>
    %263 = arith.addf %261, %262 : vector<16x1xf32>
    %264 = math.rsqrt %263 : vector<16x1xf32>
    %265 = vector.broadcast %264 : vector<16x1xf32> to vector<16x32xf32>
    %266 = arith.mulf %256, %265 : vector<16x32xf32>
    %267 = vector.broadcast %249 : vector<1x32xf32> to vector<16x32xf32>
    %268 = arith.mulf %266, %267 : vector<16x32xf32>
    %269 = vector.broadcast %250 : vector<1x32xf32> to vector<16x32xf32>
    %270 = arith.addf %268, %269 : vector<16x32xf32>
    %c0_91 = arith.constant 0 : index
    %c0_92 = arith.constant 0 : index
    %271 = vector.load %arg12[%c0_91, %c0_92] : memref<32x64xf32, #tpu.memory_space<vmem>>, vector<32x64xf32>
    %cst_93 = arith.constant dense<0.000000e+00> : vector<16x64xf32>
    %272 = tpu.matmul %270, %271, %cst_93 {dimension_numbers = #tpu.dot_dimension_numbers<[1], [0], [0], [1], [0, 0, 1, 1], [], []>} : vector<16x32xf32>, vector<32x64xf32>, vector<16x64xf32> -> vector<16x64xf32>
    %c0_94 = arith.constant 0 : index
    %c0_95 = arith.constant 0 : index
    %273 = vector.load %arg13[%c0_94, %c0_95] : memref<1x64xf32, #tpu.memory_space<vmem>>, vector<1x64xf32>
    %274 = vector.broadcast %273 : vector<1x64xf32> to vector<16x64xf32>
    %275 = arith.addf %272, %274 : vector<16x64xf32>
    %cst_96 = arith.constant 0.000000e+00 : f32
    %276 = vector.broadcast %cst_96 : f32 to vector<16x64xf32>
    %277 = arith.maximumf %275, %276 : vector<16x64xf32>
    %c0_97 = arith.constant 0 : index
    %c0_98 = arith.constant 0 : index
    %278 = vector.load %arg14[%c0_97, %c0_98] : memref<64x32xf32, #tpu.memory_space<vmem>>, vector<64x32xf32>
    %cst_99 = arith.constant dense<0.000000e+00> : vector<16x32xf32>
    %279 = tpu.matmul %277, %278, %cst_99 {dimension_numbers = #tpu.dot_dimension_numbers<[1], [0], [0], [1], [0, 0, 1, 1], [], []>} : vector<16x64xf32>, vector<64x32xf32>, vector<16x32xf32> -> vector<16x32xf32>
    %c0_100 = arith.constant 0 : index
    %c0_101 = arith.constant 0 : index
    %280 = vector.load %arg15[%c0_100, %c0_101] : memref<1x32xf32, #tpu.memory_space<vmem>>, vector<1x32xf32>
    %281 = vector.broadcast %280 : vector<1x32xf32> to vector<16x32xf32>
    %282 = arith.addf %279, %281 : vector<16x32xf32>
    %283 = arith.addf %270, %282 : vector<16x32xf32>
    %284 = vector.extract_strided_slice %8 {offsets = [4, 0], sizes = [1, 32], strides = [1, 1]} : vector<6x32xf32> to vector<1x32xf32>
    %285 = vector.extract_strided_slice %8 {offsets = [5, 0], sizes = [1, 32], strides = [1, 1]} : vector<6x32xf32> to vector<1x32xf32>
    %cst_102 = arith.constant dense<0.000000e+00> : vector<16xf32>
    %286 = vector.multi_reduction <add>, %283, %cst_102 [1] : vector<16x32xf32> to vector<16xf32>
    %287 = vector.shape_cast %286 : vector<16xf32> to vector<16x1xf32>
    %cst_103 = arith.constant 3.200000e+01 : f32
    %288 = vector.broadcast %cst_103 : f32 to vector<16x1xf32>
    %289 = arith.divf %287, %288 : vector<16x1xf32>
    %290 = vector.broadcast %289 : vector<16x1xf32> to vector<16x32xf32>
    %291 = arith.subf %283, %290 : vector<16x32xf32>
    %292 = arith.mulf %291, %291 : vector<16x32xf32>
    %cst_104 = arith.constant dense<0.000000e+00> : vector<16xf32>
    %293 = vector.multi_reduction <add>, %292, %cst_104 [1] : vector<16x32xf32> to vector<16xf32>
    %294 = vector.shape_cast %293 : vector<16xf32> to vector<16x1xf32>
    %cst_105 = arith.constant 3.200000e+01 : f32
    %295 = vector.broadcast %cst_105 : f32 to vector<16x1xf32>
    %296 = arith.divf %294, %295 : vector<16x1xf32>
    %cst_106 = arith.constant 9.99999974E-6 : f32
    %297 = vector.broadcast %cst_106 : f32 to vector<16x1xf32>
    %298 = arith.addf %296, %297 : vector<16x1xf32>
    %299 = math.rsqrt %298 : vector<16x1xf32>
    %300 = vector.broadcast %299 : vector<16x1xf32> to vector<16x32xf32>
    %301 = arith.mulf %291, %300 : vector<16x32xf32>
    %302 = vector.broadcast %284 : vector<1x32xf32> to vector<16x32xf32>
    %303 = arith.mulf %301, %302 : vector<16x32xf32>
    %304 = vector.broadcast %285 : vector<1x32xf32> to vector<16x32xf32>
    %305 = arith.addf %303, %304 : vector<16x32xf32>
    %306 = vector.shape_cast %305 : vector<16x32xf32> to vector<2x8x32xf32>
    %c0_107 = arith.constant 0 : index
    %c0_108 = arith.constant 0 : index
    %c0_109 = arith.constant 0 : index
    %307 = vector.load %arg17[%c0_107, %c0_108, %c0_109] : memref<2x8x32xf32, #tpu.memory_space<vmem>>, vector<2x8x32xf32>
    tpu.vector_store %arg17[%c0_107, %c0_108, %c0_109], %306 {strides = array<i32>} : memref<2x8x32xf32, #tpu.memory_space<vmem>>, vector<2x8x32xf32>,
    return
  }
}

</mosaic_0001>

<llo_original>
// kernel: transformer_decoder_layer.1
$region0: #{transformer_decoder_layer.1}
  #allocation0 [shape = 'u32[]', space=smem, size = 0x4, offset = 0x4, fixed_abs, tag = 'smem constant byte address 0x4 - core index']
  #allocation1 [shape = 'u32[72,128]{1,0:T(1,128)}', space=vmem, size = 0x9000, scoped, tag = 'internal scratch']
  %s0 = inlined_call_operand.vmem [shape: f32[2,8,32], index: 0, kind: input, shape index: {}]
  %s1 = inlined_call_operand.vmem [shape: f32[2,8,32], index: 1, kind: input, shape index: {}]
  %s2 = inlined_call_operand.vmem [shape: f32[2,10,32], index: 2, kind: input, shape index: {}]
  %s3 = inlined_call_operand.vmem [shape: f32[2,10,32], index: 3, kind: input, shape index: {}]
  %s4 = inlined_call_operand.vmem [shape: f32[32,96], index: 4, kind: input, shape index: {}]
  %s5 = inlined_call_operand.vmem [shape: f32[1,96], index: 5, kind: input, shape index: {}]
  %s6 = inlined_call_operand.vmem [shape: f32[32,32], index: 6, kind: input, shape index: {}]
  %s7 = inlined_call_operand.vmem [shape: f32[1,32], index: 7, kind: input, shape index: {}]
  %s8 = inlined_call_operand.vmem [shape: f32[32,96], index: 8, kind: input, shape index: {}]
  %s9 = inlined_call_operand.vmem [shape: f32[1,96], index: 9, kind: input, shape index: {}]
  %s10 = inlined_call_operand.vmem [shape: f32[32,32], index: 10, kind: input, shape index: {}]
  %s11 = inlined_call_operand.vmem [shape: f32[1,32], index: 11, kind: input, shape index: {}]
  %s12 = inlined_call_operand.vmem [shape: f32[32,64], index: 12, kind: input, shape index: {}]
  %s13 = inlined_call_operand.vmem [shape: f32[1,64], index: 13, kind: input, shape index: {}]
  %s14 = inlined_call_operand.vmem [shape: f32[64,32], index: 14, kind: input, shape index: {}]
  %s15 = inlined_call_operand.vmem [shape: f32[1,32], index: 15, kind: input, shape index: {}]
  %s16 = inlined_call_operand.vmem [shape: f32[6,32], index: 16, kind: input, shape index: {}]
  %s17 = inlined_call_operand.vmem [shape: f32[2,8,32], index: 17, kind: output, shape index: {}]
  %s18 = sld [smem:[#allocation0]]
  $region78: #{transformer_decoder_layer.1} parent=0
    _
  %s20 = ssub.s32 1, %s18
  %s21 = scalar_select 0, %s20, %s18
  // Predicated region
  $region2: #{transformer_decoder_layer.1} parent=0 // pred_check
    _
  $region3: #{transformer_decoder_layer.1} parent=0 // pred_check_branch
    %23 = sbr.rel (0) target = $region5
  $region4: #{transformer_decoder_layer.1} parent=0 // pred_region
    _
  $region5: #{transformer_decoder_layer.1} parent=0 // pred_fallthru
    _
  // Predicated region
  $region6: #{transformer_decoder_layer.1} parent=0 // pred_check
    _
  $region7: #{transformer_decoder_layer.1} parent=0 // pred_check_branch
    %25 = sbr.rel (0) target = $region9
  $region8: #{transformer_decoder_layer.1} parent=0 // pred_region
    _
  $region9: #{transformer_decoder_layer.1} parent=0 // pred_fallthru
    _
  // Predicated region
  $region10: #{transformer_decoder_layer.1} parent=0 // pred_check
    _
  $region11: #{transformer_decoder_layer.1} parent=0 // pred_check_branch
    %27 = sbr.rel (0) target = $region13
  $region12: #{transformer_decoder_layer.1} parent=0 // pred_region
    _
  $region13: #{transformer_decoder_layer.1} parent=0 // pred_fallthru
    _
  // Predicated region
  $region14: #{transformer_decoder_layer.1} parent=0 // pred_check
    _
  $region15: #{transformer_decoder_layer.1} parent=0 // pred_check_branch
    %29 = sbr.rel (0) target = $region17
  $region16: #{transformer_decoder_layer.1} parent=0 // pred_region
    _
  $region17: #{transformer_decoder_layer.1} parent=0 // pred_fallthru
    _
  // Predicated region
  $region18: #{transformer_decoder_layer.1} parent=0 // pred_check
    _
  $region19: #{transformer_decoder_layer.1} parent=0 // pred_check_branch
    %31 = sbr.rel (0) target = $region21
  $region20: #{transformer_decoder_layer.1} parent=0 // pred_region
    _
  $region21: #{transformer_decoder_layer.1} parent=0 // pred_fallthru
    _
  // Predicated region
  $region22: #{transformer_decoder_layer.1} parent=0 // pred_check
    _
  $region23: #{transformer_decoder_layer.1} parent=0 // pred_check_branch
    %33 = sbr.rel (0) target = $region25
  $region24: #{transformer_decoder_layer.1} parent=0 // pred_region
    _
  $region25: #{transformer_decoder_layer.1} parent=0 // pred_fallthru
    _
  // Predicated region
  $region26: #{transformer_decoder_layer.1} parent=0 // pred_check
    _
  $region27: #{transformer_decoder_layer.1} parent=0 // pred_check_branch
    %35 = sbr.rel (0) target = $region29
  $region28: #{transformer_decoder_layer.1} parent=0 // pred_region
    _
  $region29: #{transformer_decoder_layer.1} parent=0 // pred_fallthru
    _
  // Predicated region
  $region30: #{transformer_decoder_layer.1} parent=0 // pred_check
    _
  $region31: #{transformer_decoder_layer.1} parent=0 // pred_check_branch
    %37 = sbr.rel (0) target = $region33
  $region32: #{transformer_decoder_layer.1} parent=0 // pred_region
    _
  $region33: #{transformer_decoder_layer.1} parent=0 // pred_fallthru
    _
  // Predicated region
  $region34: #{transformer_decoder_layer.1} parent=0 // pred_check
    _
  $region35: #{transformer_decoder_layer.1} parent=0 // pred_check_branch
    %39 = sbr.rel (0) target = $region37
  $region36: #{transformer_decoder_layer.1} parent=0 // pred_region
    _
  $region37: #{transformer_decoder_layer.1} parent=0 // pred_fallthru
    _
  // Predicated region
  $region38: #{transformer_decoder_layer.1} parent=0 // pred_check
    _
  $region39: #{transformer_decoder_layer.1} parent=0 // pred_check_branch
    %41 = sbr.rel (0) target = $region41
  $region40: #{transformer_decoder_layer.1} parent=0 // pred_region
    _
  $region41: #{transformer_decoder_layer.1} parent=0 // pred_fallthru
    _
  // Predicated region
  $region42: #{transformer_decoder_layer.1} parent=0 // pred_check
    _
  $region43: #{transformer_decoder_layer.1} parent=0 // pred_check_branch
    %43 = sbr.rel (0) target = $region45
  $region44: #{transformer_decoder_layer.1} parent=0 // pred_region
    _
  $region45: #{transformer_decoder_layer.1} parent=0 // pred_fallthru
    _
  // Predicated region
  $region46: #{transformer_decoder_layer.1} parent=0 // pred_check
    _
  $region47: #{transformer_decoder_layer.1} parent=0 // pred_check_branch
    %45 = sbr.rel (0) target = $region49
  $region48: #{transformer_decoder_layer.1} parent=0 // pred_region
    _
  $region49: #{transformer_decoder_layer.1} parent=0 // pred_fallthru
    _
  // Predicated region
  $region50: #{transformer_decoder_layer.1} parent=0 // pred_check
    _
  $region51: #{transformer_decoder_layer.1} parent=0 // pred_check_branch
    %47 = sbr.rel (0) target = $region53
  $region52: #{transformer_decoder_layer.1} parent=0 // pred_region
    _
  $region53: #{transformer_decoder_layer.1} parent=0 // pred_fallthru
    _
  // Predicated region
  $region54: #{transformer_decoder_layer.1} parent=0 // pred_check
    _
  $region55: #{transformer_decoder_layer.1} parent=0 // pred_check_branch
    %49 = sbr.rel (0) target = $region57
  $region56: #{transformer_decoder_layer.1} parent=0 // pred_region
    _
  $region57: #{transformer_decoder_layer.1} parent=0 // pred_fallthru
    _
  // Predicated region
  $region58: #{transformer_decoder_layer.1} parent=0 // pred_check
    _
  $region59: #{transformer_decoder_layer.1} parent=0 // pred_check_branch
    %51 = sbr.rel (0) target = $region61
  $region60: #{transformer_decoder_layer.1} parent=0 // pred_region
    _
  $region61: #{transformer_decoder_layer.1} parent=0 // pred_fallthru
    _
  // Predicated region
  $region62: #{transformer_decoder_layer.1} parent=0 // pred_check
    _
  $region63: #{transformer_decoder_layer.1} parent=0 // pred_check_branch
    %53 = sbr.rel (0) target = $region65
  $region64: #{transformer_decoder_layer.1} parent=0 // pred_region
    _
  $region65: #{transformer_decoder_layer.1} parent=0 // pred_fallthru
    _
  // Predicated region
  $region66: #{transformer_decoder_layer.1} parent=0 // pred_check
    _
  $region67: #{transformer_decoder_layer.1} parent=0 // pred_check_branch
    %55 = sbr.rel (0) target = $region69
  $region68: #{transformer_decoder_layer.1} parent=0 // pred_region
    _
  $region69: #{transformer_decoder_layer.1} parent=0 // pred_fallthru
    _
  %v56 = vld [vmem:[%s0] sm:$0xff]
  %v57 = vld [vmem:[%s0 + $0x8] sm:$0xff]
  %v58 = vld [vmem:[%s1] sm:$0xff]
  %v59 = vld [vmem:[%s1 + $0x8] sm:$0xff]
  %v60 = vld [vmem:[%s2] sm:$0xff]
  %v61 = vld [vmem:[%s2 + $0x8] sm:$0x3]
  %v62 = vld [vmem:[%s2 + $0x10] sm:$0xff]
  %v63 = vld [vmem:[%s2 + $0x18] sm:$0x3]
  %v68 = vrot.slane %v60, 2
  %v69 = vrot.slane %v60, 4
  %v70 = vrot.slane %v60, 6
  %v71 = vrot.slane %v62, 2
  %v72 = vrot.slane %v62, 4
  %v73 = vrot.slane %v62, 6
  %v80 = vld [vmem:[%s3] sm:$0xff]
  %v81 = vld [vmem:[%s3 + $0x8] sm:$0x3]
  %v82 = vld [vmem:[%s3 + $0x10] sm:$0xff]
  %v83 = vld [vmem:[%s3 + $0x18] sm:$0x3]
  %v86 = vrot.slane %v80, 2
  %v87 = vrot.slane %v80, 4
  %v88 = vrot.slane %v80, 6
  %v89 = vrot.slane %v82, 2
  %v90 = vrot.slane %v82, 4
  %v91 = vrot.slane %v82, 6
  %v98 = vld [vmem:[%s16] sm:$0x3f]
  %v99 = vadd.f32 %v56, %v58
  %v100 = vadd.f32 %v57, %v59
  %v101 = vld [vmem:[%s4] sm:$0xff]
  %v102 = vld [vmem:[%s4 + $0x8] sm:$0xff]
  %v103 = vld [vmem:[%s4 + $0x10] sm:$0xff]
  %v104 = vld [vmem:[%s4 + $0x18] sm:$0xff]
  %v105 = vld [vmem:[%s5] sm:$0x1]
  %v106 = vld [vmem:[%s6] sm:$0xff]
  %v107 = vld [vmem:[%s6 + $0x8] sm:$0xff]
  %v108 = vld [vmem:[%s6 + $0x10] sm:$0xff]
  %v109 = vld [vmem:[%s6 + $0x18] sm:$0xff]
  %v110 = vld [vmem:[%s7] sm:$0x1]
  %v112 = vperm.slane %v105, 0
  %vm114 = vcmask 261120
  %v116 = vsel %vm114, %v99, 0
  %v119 = vsel %vm114, %v100, 0
  %121 = vmatpush.msra.mxu0 0.0
  %122 = vmatpush.msra.mxu0 0.0
  %123 = vmatpush.msra.mxu0 0.0
  %124 = vmatpush.msra.mxu0 0.0
  %125 = vmatpush.msra.mxu0 0.0
  %126 = vmatpush.msra.mxu0 0.0
  %127 = vmatpush.msra.mxu0 0.0
  %128 = vmatpush.msra.mxu0 0.0
  %129 = vmatpush.msra.mxu0 0.0
  %130 = vmatpush.msra.mxu0 0.0
  %131 = vmatpush.msra.mxu0 0.0
  %132 = vmatpush.msra.mxu0 0.0
  %133 = vmatpush.msra.mxu0 %v104
  %134 = vmatpush.msra.mxu0 %v103
  %135 = vmatpush.msra.mxu0 %v102
  %136 = vmatpush.msra.mxu0 %v101
  %137 = vmatmul.f32.gmra.mxu0 %v116
  %v138 = vpop.f32.mrf.mxu0
  %v139 = vadd.f32 %v112, %v138
  %140 = vmatmul.f32.gmra.mxu0 %v119
  %v141 = vpop.f32.mrf.mxu0
  %v142 = vadd.f32 %v112, %v141
  %143 = vdwg.mxu0
  %148 = vrot.lane.b32.xlu0 %v101, 64
  %v149 = vpop.permute.xlu0 %148
  %150 = vrot.lane.b32.xlu0 %v102, 64
  %v151 = vpop.permute.xlu0 %150
  %152 = vrot.lane.b32.xlu0 %v103, 64
  %v153 = vpop.permute.xlu0 %152
  %154 = vrot.lane.b32.xlu0 %v104, 64
  %v155 = vpop.permute.xlu0 %154
  %160 = vrot.lane.b32.xlu0 %v112, 64
  %v161 = vpop.permute.xlu0 %160
  %v164 = vsel %vm114, %v56, 0
  %v167 = vsel %vm114, %v57, 0
  %169 = vmatpush.msra.mxu0 0.0
  %170 = vmatpush.msra.mxu0 0.0
  %171 = vmatpush.msra.mxu0 0.0
  %172 = vmatpush.msra.mxu0 0.0
  %173 = vmatpush.msra.mxu0 0.0
  %174 = vmatpush.msra.mxu0 0.0
  %175 = vmatpush.msra.mxu0 0.0
  %176 = vmatpush.msra.mxu0 0.0
  %177 = vmatpush.msra.mxu0 0.0
  %178 = vmatpush.msra.mxu0 0.0
  %179 = vmatpush.msra.mxu0 0.0
  %180 = vmatpush.msra.mxu0 0.0
  %181 = vmatpush.msra.mxu0 %v155
  %182 = vmatpush.msra.mxu0 %v153
  %183 = vmatpush.msra.mxu0 %v151
  %184 = vmatpush.msra.mxu0 %v149
  %185 = vmatmul.f32.gmra.mxu0 %v164
  %v186 = vpop.f32.mrf.mxu0
  %v187 = vadd.f32 %v161, %v186
  %188 = vmatmul.f32.gmra.mxu0 %v167
  %v189 = vpop.f32.mrf.mxu0
  %v190 = vadd.f32 %v161, %v189
  %191 = vdwg.mxu0
  %v193 = vperm.slane %v110, 0
  %196 = vrot.lane.b32.xlu0 %v139, 96
  %v197 = vpop.permute.xlu0 %196
  %vm198 = vcmask 64512
  %v199 = vsel %vm198, %v139, 0
  %v201 = vsel %vm198, %v197, 0
  %203 = vmatpush.xpose.msra.mxu0 0.0
  %204 = vmatpush.xpose.msra.mxu0 0.0
  %205 = vmatpush.xpose.msra.mxu0 0.0
  %206 = vmatpush.xpose.msra.mxu0 0.0
  %207 = vmatpush.xpose.msra.mxu0 0.0
  %208 = vmatpush.xpose.msra.mxu0 0.0
  %209 = vmatpush.xpose.msra.mxu0 0.0
  %210 = vmatpush.xpose.msra.mxu0 0.0
  %211 = vmatpush.xpose.msra.mxu0 0.0
  %212 = vmatpush.xpose.msra.mxu0 0.0
  %213 = vmatpush.xpose.msra.mxu0 0.0
  %214 = vmatpush.xpose.msra.mxu0 0.0
  %215 = vmatpush.xpose.msra.mxu0 0.0
  %216 = vmatpush.xpose.msra.mxu0 0.0
  %217 = vmatpush.xpose.msra.mxu0 0.0
  %218 = vmatpush.xpose.msra.mxu0 %v201
  %219 = vmatmul.f32.gmra.mxu0 %v199
  %v220 = vpop.f32.mrf.mxu0
  %v221 = vadd.f32 0.0, %v220
  %222 = vdwg.mxu0
  %224 = vrot.lane.b32.xlu0 %v142, 96
  %v225 = vpop.permute.xlu0 %224
  %v226 = vsel %vm198, %v142, 0
  %v228 = vsel %vm198, %v225, 0
  %230 = vmatpush.xpose.msra.mxu0 0.0
  %231 = vmatpush.xpose.msra.mxu0 0.0
  %232 = vmatpush.xpose.msra.mxu0 0.0
  %233 = vmatpush.xpose.msra.mxu0 0.0
  %234 = vmatpush.xpose.msra.mxu0 0.0
  %235 = vmatpush.xpose.msra.mxu0 0.0
  %236 = vmatpush.xpose.msra.mxu0 0.0
  %237 = vmatpush.xpose.msra.mxu0 0.0
  %238 = vmatpush.xpose.msra.mxu0 0.0
  %239 = vmatpush.xpose.msra.mxu0 0.0
  %240 = vmatpush.xpose.msra.mxu0 0.0
  %241 = vmatpush.xpose.msra.mxu0 0.0
  %242 = vmatpush.xpose.msra.mxu0 0.0
  %243 = vmatpush.xpose.msra.mxu0 0.0
  %244 = vmatpush.xpose.msra.mxu0 0.0
  %245 = vmatpush.xpose.msra.mxu0 %v228
  %246 = vmatmul.f32.gmra.mxu0 %v226
  %v247 = vpop.f32.mrf.mxu0
  %v248 = vadd.f32 0.0, %v247
  %249 = vdwg.mxu0
  %v250 = vmul.f32 %v221, 0.35355338
  %v251 = vmul.f32 %v248, 0.35355338
  %v252 = vsel %vm198, %v250, -inf
  %253 = vmax.xlane.f32.xlu0 %v252
  %v254 = vpop.xlane.xlu0 %253
  %v255 = vsel %vm198, %v251, -inf
  %256 = vmax.xlane.f32.xlu0 %v255
  %v257 = vpop.xlane.xlu0 %256
  %v258 = vsub.f32 %v250, %v254
  %v259 = vsub.f32 %v251, %v257
  %v260 = vmul.f32 %v258, 1.442695
  %v261 = vpow.pop %v260
  %v262 = vmul.f32 %v259, 1.442695
  %v263 = vpow.pop %v262
  %v264 = vsel %vm198, %v261, 0.0
  %265 = vadd.xlane.f32.xlu0 %v264
  %v266 = vpop.xlane.xlu0 %265
  %v267 = vsel %vm198, %v263, 0.0
  %268 = vadd.xlane.f32.xlu0 %v267
  %v269 = vpop.xlane.xlu0 %268
  %v270 = vrcp.pop %v266
  %v271 = vrcp.pop %v269
  %v272 = vmul.f32 %v261, %v270
  %v273 = vmul.f32 %v263, %v271
  %v275 = vsel %vm198, %v272, 0
  %277 = vmatpush.msra.mxu0 0.0
  %278 = vmatpush.msra.mxu0 0.0
  %279 = vmatpush.msra.mxu0 0.0
  %280 = vmatpush.msra.mxu0 0.0
  %281 = vmatpush.msra.mxu0 0.0
  %282 = vmatpush.msra.mxu0 0.0
  %283 = vmatpush.msra.mxu0 0.0
  %284 = vmatpush.msra.mxu0 0.0
  %285 = vmatpush.msra.mxu0 0.0
  %286 = vmatpush.msra.mxu0 0.0
  %287 = vmatpush.msra.mxu0 0.0
  %288 = vmatpush.msra.mxu0 0.0
  %289 = vmatpush.msra.mxu0 0.0
  %290 = vmatpush.msra.mxu0 0.0
  %291 = vmatpush.msra.mxu0 0.0
  %292 = vmatpush.msra.mxu0 %v187
  %293 = vmatmul.f32.gmra.mxu0 %v275
  %v294 = vpop.f32.mrf.mxu0
  %v295 = vadd.f32 0.0, %v294
  %296 = vdwg.mxu0
  %v298 = vsel %vm198, %v273, 0
  %300 = vmatpush.msra.mxu0 0.0
  %301 = vmatpush.msra.mxu0 0.0
  %302 = vmatpush.msra.mxu0 0.0
  %303 = vmatpush.msra.mxu0 0.0
  %304 = vmatpush.msra.mxu0 0.0
  %305 = vmatpush.msra.mxu0 0.0
  %306 = vmatpush.msra.mxu0 0.0
  %307 = vmatpush.msra.mxu0 0.0
  %308 = vmatpush.msra.mxu0 0.0
  %309 = vmatpush.msra.mxu0 0.0
  %310 = vmatpush.msra.mxu0 0.0
  %311 = vmatpush.msra.mxu0 0.0
  %312 = vmatpush.msra.mxu0 0.0
  %313 = vmatpush.msra.mxu0 0.0
  %314 = vmatpush.msra.mxu0 0.0
  %315 = vmatpush.msra.mxu0 %v190
  %316 = vmatmul.f32.gmra.mxu0 %v298
  %v317 = vpop.f32.mrf.mxu0
  %v318 = vadd.f32 0.0, %v317
  %319 = vdwg.mxu0
  %v321 = vsel %vm198, %v295, 0
  %v324 = vsel %vm198, %v318, 0
  %326 = vmatpush.msra.mxu0 0.0
  %327 = vmatpush.msra.mxu0 0.0
  %328 = vmatpush.msra.mxu0 0.0
  %329 = vmatpush.msra.mxu0 0.0
  %330 = vmatpush.msra.mxu0 0.0
  %331 = vmatpush.msra.mxu0 0.0
  %332 = vmatpush.msra.mxu0 0.0
  %333 = vmatpush.msra.mxu0 0.0
  %334 = vmatpush.msra.mxu0 0.0
  %335 = vmatpush.msra.mxu0 0.0
  %336 = vmatpush.msra.mxu0 0.0
  %337 = vmatpush.msra.mxu0 0.0
  %338 = vmatpush.msra.mxu0 0.0
  %339 = vmatpush.msra.mxu0 0.0
  %340 = vmatpush.msra.mxu0 0.0
  %341 = vmatpush.msra.mxu0 %v106
  %342 = vmatmul.f32.gmra.mxu0 %v321
  %v343 = vpop.f32.mrf.mxu0
  %v344 = vadd.f32 0.0, %v343
  %345 = vmatmul.f32.gmra.mxu0 %v324
  %v346 = vpop.f32.mrf.mxu0
  %v347 = vadd.f32 0.0, %v346
  %348 = vdwg.mxu0
  %v349 = vadd.f32 %v193, %v344
  %v350 = vadd.f32 %v193, %v347
  %351 = vrot.lane.b32.xlu0 %v139, 120
  %v352 = vpop.permute.xlu0 %351
  %353 = vrot.lane.b32.xlu0 %v139, 88
  %v354 = vpop.permute.xlu0 %353
  %v355 = vsel %vm198, %v352, 0
  %v357 = vsel %vm198, %v354, 0
  %359 = vmatpush.xpose.msra.mxu0 0.0
  %360 = vmatpush.xpose.msra.mxu0 0.0
  %361 = vmatpush.xpose.msra.mxu0 0.0
  %362 = vmatpush.xpose.msra.mxu0 0.0
  %363 = vmatpush.xpose.msra.mxu0 0.0
  %364 = vmatpush.xpose.msra.mxu0 0.0
  %365 = vmatpush.xpose.msra.mxu0 0.0
  %366 = vmatpush.xpose.msra.mxu0 0.0
  %367 = vmatpush.xpose.msra.mxu0 0.0
  %368 = vmatpush.xpose.msra.mxu0 0.0
  %369 = vmatpush.xpose.msra.mxu0 0.0
  %370 = vmatpush.xpose.msra.mxu0 0.0
  %371 = vmatpush.xpose.msra.mxu0 0.0
  %372 = vmatpush.xpose.msra.mxu0 0.0
  %373 = vmatpush.xpose.msra.mxu0 0.0
  %374 = vmatpush.xpose.msra.mxu0 %v357
  %375 = vmatmul.f32.gmra.mxu0 %v355
  %v376 = vpop.f32.mrf.mxu0
  %v377 = vadd.f32 0.0, %v376
  %378 = vdwg.mxu0
  %379 = vrot.lane.b32.xlu0 %v142, 120
  %v380 = vpop.permute.xlu0 %379
  %381 = vrot.lane.b32.xlu0 %v142, 88
  %v382 = vpop.permute.xlu0 %381
  %v383 = vsel %vm198, %v380, 0
  %v385 = vsel %vm198, %v382, 0
  %387 = vmatpush.xpose.msra.mxu0 0.0
  %388 = vmatpush.xpose.msra.mxu0 0.0
  %389 = vmatpush.xpose.msra.mxu0 0.0
  %390 = vmatpush.xpose.msra.mxu0 0.0
  %391 = vmatpush.xpose.msra.mxu0 0.0
  %392 = vmatpush.xpose.msra.mxu0 0.0
  %393 = vmatpush.xpose.msra.mxu0 0.0
  %394 = vmatpush.xpose.msra.mxu0 0.0
  %395 = vmatpush.xpose.msra.mxu0 0.0
  %396 = vmatpush.xpose.msra.mxu0 0.0
  %397 = vmatpush.xpose.msra.mxu0 0.0
  %398 = vmatpush.xpose.msra.mxu0 0.0
  %399 = vmatpush.xpose.msra.mxu0 0.0
  %400 = vmatpush.xpose.msra.mxu0 0.0
  %401 = vmatpush.xpose.msra.mxu0 0.0
  %402 = vmatpush.xpose.msra.mxu0 %v385
  %403 = vmatmul.f32.gmra.mxu0 %v383
  %v404 = vpop.f32.mrf.mxu0
  %v405 = vadd.f32 0.0, %v404
  %406 = vdwg.mxu0
  %v407 = vmul.f32 %v377, 0.35355338
  %v408 = vmul.f32 %v405, 0.35355338
  %v409 = vsel %vm198, %v407, -inf
  %410 = vmax.xlane.f32.xlu0 %v409
  %v411 = vpop.xlane.xlu0 %410
  %v412 = vsel %vm198, %v408, -inf
  %413 = vmax.xlane.f32.xlu0 %v412
  %v414 = vpop.xlane.xlu0 %413
  %v415 = vsub.f32 %v407, %v411
  %v416 = vsub.f32 %v408, %v414
  %v417 = vmul.f32 %v415, 1.442695
  %v418 = vpow.pop %v417
  %v419 = vmul.f32 %v416, 1.442695
  %v420 = vpow.pop %v419
  %v421 = vsel %vm198, %v418, 0.0
  %422 = vadd.xlane.f32.xlu0 %v421
  %v423 = vpop.xlane.xlu0 %422
  %v424 = vsel %vm198, %v420, 0.0
  %425 = vadd.xlane.f32.xlu0 %v424
  %v426 = vpop.xlane.xlu0 %425
  %v427 = vrcp.pop %v423
  %v428 = vrcp.pop %v426
  %v429 = vmul.f32 %v418, %v427
  %v430 = vmul.f32 %v420, %v428
  %432 = vrot.lane.b32.xlu0 %v187, 120
  %v433 = vpop.permute.xlu0 %432
  %v436 = vsel %vm198, %v429, 0
  %438 = vmatpush.msra.mxu0 0.0
  %439 = vmatpush.msra.mxu0 0.0
  %440 = vmatpush.msra.mxu0 0.0
  %441 = vmatpush.msra.mxu0 0.0
  %442 = vmatpush.msra.mxu0 0.0
  %443 = vmatpush.msra.mxu0 0.0
  %444 = vmatpush.msra.mxu0 0.0
  %445 = vmatpush.msra.mxu0 0.0
  %446 = vmatpush.msra.mxu0 0.0
  %447 = vmatpush.msra.mxu0 0.0
  %448 = vmatpush.msra.mxu0 0.0
  %449 = vmatpush.msra.mxu0 0.0
  %450 = vmatpush.msra.mxu0 0.0
  %451 = vmatpush.msra.mxu0 0.0
  %452 = vmatpush.msra.mxu0 0.0
  %453 = vmatpush.msra.mxu0 %v433
  %454 = vmatmul.f32.gmra.mxu0 %v436
  %v455 = vpop.f32.mrf.mxu0
  %v456 = vadd.f32 0.0, %v455
  %457 = vdwg.mxu0
  %459 = vrot.lane.b32.xlu0 %v190, 120
  %v460 = vpop.permute.xlu0 %459
  %v463 = vsel %vm198, %v430, 0
  %465 = vmatpush.msra.mxu0 0.0
  %466 = vmatpush.msra.mxu0 0.0
  %467 = vmatpush.msra.mxu0 0.0
  %468 = vmatpush.msra.mxu0 0.0
  %469 = vmatpush.msra.mxu0 0.0
  %470 = vmatpush.msra.mxu0 0.0
  %471 = vmatpush.msra.mxu0 0.0
  %472 = vmatpush.msra.mxu0 0.0
  %473 = vmatpush.msra.mxu0 0.0
  %474 = vmatpush.msra.mxu0 0.0
  %475 = vmatpush.msra.mxu0 0.0
  %476 = vmatpush.msra.mxu0 0.0
  %477 = vmatpush.msra.mxu0 0.0
  %478 = vmatpush.msra.mxu0 0.0
  %479 = vmatpush.msra.mxu0 0.0
  %480 = vmatpush.msra.mxu0 %v460
  %481 = vmatmul.f32.gmra.mxu0 %v463
  %v482 = vpop.f32.mrf.mxu0
  %v483 = vadd.f32 0.0, %v482
  %484 = vdwg.mxu0
  %v486 = vsel %vm198, %v456, 0
  %v489 = vsel %vm198, %v483, 0
  %491 = vmatpush.msra.mxu0 0.0
  %492 = vmatpush.msra.mxu0 0.0
  %493 = vmatpush.msra.mxu0 0.0
  %494 = vmatpush.msra.mxu0 0.0
  %495 = vmatpush.msra.mxu0 0.0
  %496 = vmatpush.msra.mxu0 0.0
  %497 = vmatpush.msra.mxu0 0.0
  %498 = vmatpush.msra.mxu0 0.0
  %499 = vmatpush.msra.mxu0 0.0
  %500 = vmatpush.msra.mxu0 0.0
  %501 = vmatpush.msra.mxu0 0.0
  %502 = vmatpush.msra.mxu0 0.0
  %503 = vmatpush.msra.mxu0 0.0
  %504 = vmatpush.msra.mxu0 0.0
  %505 = vmatpush.msra.mxu0 0.0
  %506 = vmatpush.msra.mxu0 %v107
  %507 = vmatmul.f32.gmra.mxu0 %v486
  %v508 = vpop.f32.mrf.mxu0
  %v509 = vadd.f32 0.0, %v508
  %510 = vmatmul.f32.gmra.mxu0 %v489
  %v511 = vpop.f32.mrf.mxu0
  %v512 = vadd.f32 0.0, %v511
  %513 = vdwg.mxu0
  %v514 = vadd.f32 %v349, %v509
  %v515 = vadd.f32 %v350, %v512
  %516 = vrot.lane.b32.xlu0 %v139, 112
  %v517 = vpop.permute.xlu0 %516
  %518 = vrot.lane.b32.xlu0 %v139, 80
  %v519 = vpop.permute.xlu0 %518
  %v520 = vsel %vm198, %v517, 0
  %v522 = vsel %vm198, %v519, 0
  %524 = vmatpush.xpose.msra.mxu0 0.0
  %525 = vmatpush.xpose.msra.mxu0 0.0
  %526 = vmatpush.xpose.msra.mxu0 0.0
  %527 = vmatpush.xpose.msra.mxu0 0.0
  %528 = vmatpush.xpose.msra.mxu0 0.0
  %529 = vmatpush.xpose.msra.mxu0 0.0
  %530 = vmatpush.xpose.msra.mxu0 0.0
  %531 = vmatpush.xpose.msra.mxu0 0.0
  %532 = vmatpush.xpose.msra.mxu0 0.0
  %533 = vmatpush.xpose.msra.mxu0 0.0
  %534 = vmatpush.xpose.msra.mxu0 0.0
  %535 = vmatpush.xpose.msra.mxu0 0.0
  %536 = vmatpush.xpose.msra.mxu0 0.0
  %537 = vmatpush.xpose.msra.mxu0 0.0
  %538 = vmatpush.xpose.msra.mxu0 0.0
  %539 = vmatpush.xpose.msra.mxu0 %v522
  %540 = vmatmul.f32.gmra.mxu0 %v520
  %v541 = vpop.f32.mrf.mxu0
  %v542 = vadd.f32 0.0, %v541
  %543 = vdwg.mxu0
  %544 = vrot.lane.b32.xlu0 %v142, 112
  %v545 = vpop.permute.xlu0 %544
  %546 = vrot.lane.b32.xlu0 %v142, 80
  %v547 = vpop.permute.xlu0 %546
  %v548 = vsel %vm198, %v545, 0
  %v550 = vsel %vm198, %v547, 0
  %552 = vmatpush.xpose.msra.mxu0 0.0
  %553 = vmatpush.xpose.msra.mxu0 0.0
  %554 = vmatpush.xpose.msra.mxu0 0.0
  %555 = vmatpush.xpose.msra.mxu0 0.0
  %556 = vmatpush.xpose.msra.mxu0 0.0
  %557 = vmatpush.xpose.msra.mxu0 0.0
  %558 = vmatpush.xpose.msra.mxu0 0.0
  %559 = vmatpush.xpose.msra.mxu0 0.0
  %560 = vmatpush.xpose.msra.mxu0 0.0
  %561 = vmatpush.xpose.msra.mxu0 0.0
  %562 = vmatpush.xpose.msra.mxu0 0.0
  %563 = vmatpush.xpose.msra.mxu0 0.0
  %564 = vmatpush.xpose.msra.mxu0 0.0
  %565 = vmatpush.xpose.msra.mxu0 0.0
  %566 = vmatpush.xpose.msra.mxu0 0.0
  %567 = vmatpush.xpose.msra.mxu0 %v550
  %568 = vmatmul.f32.gmra.mxu0 %v548
  %v569 = vpop.f32.mrf.mxu0
  %v570 = vadd.f32 0.0, %v569
  %571 = vdwg.mxu0
  %v572 = vmul.f32 %v542, 0.35355338
  %v573 = vmul.f32 %v570, 0.35355338
  %v574 = vsel %vm198, %v572, -inf
  %575 = vmax.xlane.f32.xlu0 %v574
  %v576 = vpop.xlane.xlu0 %575
  %v577 = vsel %vm198, %v573, -inf
  %578 = vmax.xlane.f32.xlu0 %v577
  %v579 = vpop.xlane.xlu0 %578
  %v580 = vsub.f32 %v572, %v576
  %v581 = vsub.f32 %v573, %v579
  %v582 = vmul.f32 %v580, 1.442695
  %v583 = vpow.pop %v582
  %v584 = vmul.f32 %v581, 1.442695
  %v585 = vpow.pop %v584
  %v586 = vsel %vm198, %v583, 0.0
  %587 = vadd.xlane.f32.xlu0 %v586
  %v588 = vpop.xlane.xlu0 %587
  %v589 = vsel %vm198, %v585, 0.0
  %590 = vadd.xlane.f32.xlu0 %v589
  %v591 = vpop.xlane.xlu0 %590
  %v592 = vrcp.pop %v588
  %v593 = vrcp.pop %v591
  %v594 = vmul.f32 %v583, %v592
  %v595 = vmul.f32 %v585, %v593
  %596 = vrot.lane.b32.xlu0 %v187, 112
  %v597 = vpop.permute.xlu0 %596
  %v600 = vsel %vm198, %v594, 0
  %602 = vmatpush.msra.mxu0 0.0
  %603 = vmatpush.msra.mxu0 0.0
  %604 = vmatpush.msra.mxu0 0.0
  %605 = vmatpush.msra.mxu0 0.0
  %606 = vmatpush.msra.mxu0 0.0
  %607 = vmatpush.msra.mxu0 0.0
  %608 = vmatpush.msra.mxu0 0.0
  %609 = vmatpush.msra.mxu0 0.0
  %610 = vmatpush.msra.mxu0 0.0
  %611 = vmatpush.msra.mxu0 0.0
  %612 = vmatpush.msra.mxu0 0.0
  %613 = vmatpush.msra.mxu0 0.0
  %614 = vmatpush.msra.mxu0 0.0
  %615 = vmatpush.msra.mxu0 0.0
  %616 = vmatpush.msra.mxu0 0.0
  %617 = vmatpush.msra.mxu0 %v597
  %618 = vmatmul.f32.gmra.mxu0 %v600
  %v619 = vpop.f32.mrf.mxu0
  %v620 = vadd.f32 0.0, %v619
  %621 = vdwg.mxu0
  %622 = vrot.lane.b32.xlu0 %v190, 112
  %v623 = vpop.permute.xlu0 %622
  %v626 = vsel %vm198, %v595, 0
  %628 = vmatpush.msra.mxu0 0.0
  %629 = vmatpush.msra.mxu0 0.0
  %630 = vmatpush.msra.mxu0 0.0
  %631 = vmatpush.msra.mxu0 0.0
  %632 = vmatpush.msra.mxu0 0.0
  %633 = vmatpush.msra.mxu0 0.0
  %634 = vmatpush.msra.mxu0 0.0
  %635 = vmatpush.msra.mxu0 0.0
  %636 = vmatpush.msra.mxu0 0.0
  %637 = vmatpush.msra.mxu0 0.0
  %638 = vmatpush.msra.mxu0 0.0
  %639 = vmatpush.msra.mxu0 0.0
  %640 = vmatpush.msra.mxu0 0.0
  %641 = vmatpush.msra.mxu0 0.0
  %642 = vmatpush.msra.mxu0 0.0
  %643 = vmatpush.msra.mxu0 %v623
  %644 = vmatmul.f32.gmra.mxu0 %v626
  %v645 = vpop.f32.mrf.mxu0
  %v646 = vadd.f32 0.0, %v645
  %647 = vdwg.mxu0
  %v649 = vsel %vm198, %v620, 0
  %v652 = vsel %vm198, %v646, 0
  %654 = vmatpush.msra.mxu0 0.0
  %655 = vmatpush.msra.mxu0 0.0
  %656 = vmatpush.msra.mxu0 0.0
  %657 = vmatpush.msra.mxu0 0.0
  %658 = vmatpush.msra.mxu0 0.0
  %659 = vmatpush.msra.mxu0 0.0
  %660 = vmatpush.msra.mxu0 0.0
  %661 = vmatpush.msra.mxu0 0.0
  %662 = vmatpush.msra.mxu0 0.0
  %663 = vmatpush.msra.mxu0 0.0
  %664 = vmatpush.msra.mxu0 0.0
  %665 = vmatpush.msra.mxu0 0.0
  %666 = vmatpush.msra.mxu0 0.0
  %667 = vmatpush.msra.mxu0 0.0
  %668 = vmatpush.msra.mxu0 0.0
  %669 = vmatpush.msra.mxu0 %v108
  %670 = vmatmul.f32.gmra.mxu0 %v649
  %v671 = vpop.f32.mrf.mxu0
  %v672 = vadd.f32 0.0, %v671
  %673 = vmatmul.f32.gmra.mxu0 %v652
  %v674 = vpop.f32.mrf.mxu0
  %v675 = vadd.f32 0.0, %v674
  %676 = vdwg.mxu0
  %v677 = vadd.f32 %v514, %v672
  %v678 = vadd.f32 %v515, %v675
  %679 = vrot.lane.b32.xlu0 %v139, 104
  %v680 = vpop.permute.xlu0 %679
  %681 = vrot.lane.b32.xlu0 %v139, 72
  %v682 = vpop.permute.xlu0 %681
  %v683 = vsel %vm198, %v680, 0
  %v685 = vsel %vm198, %v682, 0
  %687 = vmatpush.xpose.msra.mxu0 0.0
  %688 = vmatpush.xpose.msra.mxu0 0.0
  %689 = vmatpush.xpose.msra.mxu0 0.0
  %690 = vmatpush.xpose.msra.mxu0 0.0
  %691 = vmatpush.xpose.msra.mxu0 0.0
  %692 = vmatpush.xpose.msra.mxu0 0.0
  %693 = vmatpush.xpose.msra.mxu0 0.0
  %694 = vmatpush.xpose.msra.mxu0 0.0
  %695 = vmatpush.xpose.msra.mxu0 0.0
  %696 = vmatpush.xpose.msra.mxu0 0.0
  %697 = vmatpush.xpose.msra.mxu0 0.0
  %698 = vmatpush.xpose.msra.mxu0 0.0
  %699 = vmatpush.xpose.msra.mxu0 0.0
  %700 = vmatpush.xpose.msra.mxu0 0.0
  %701 = vmatpush.xpose.msra.mxu0 0.0
  %702 = vmatpush.xpose.msra.mxu0 %v685
  %703 = vmatmul.f32.gmra.mxu0 %v683
  %v704 = vpop.f32.mrf.mxu0
  %v705 = vadd.f32 0.0, %v704
  %706 = vdwg.mxu0
  %707 = vrot.lane.b32.xlu0 %v142, 104
  %v708 = vpop.permute.xlu0 %707
  %709 = vrot.lane.b32.xlu0 %v142, 72
  %v710 = vpop.permute.xlu0 %709
  %v711 = vsel %vm198, %v708, 0
  %v713 = vsel %vm198, %v710, 0
  %715 = vmatpush.xpose.msra.mxu0 0.0
  %716 = vmatpush.xpose.msra.mxu0 0.0
  %717 = vmatpush.xpose.msra.mxu0 0.0
  %718 = vmatpush.xpose.msra.mxu0 0.0
  %719 = vmatpush.xpose.msra.mxu0 0.0
  %720 = vmatpush.xpose.msra.mxu0 0.0
  %721 = vmatpush.xpose.msra.mxu0 0.0
  %722 = vmatpush.xpose.msra.mxu0 0.0
  %723 = vmatpush.xpose.msra.mxu0 0.0
  %724 = vmatpush.xpose.msra.mxu0 0.0
  %725 = vmatpush.xpose.msra.mxu0 0.0
  %726 = vmatpush.xpose.msra.mxu0 0.0
  %727 = vmatpush.xpose.msra.mxu0 0.0
  %728 = vmatpush.xpose.msra.mxu0 0.0
  %729 = vmatpush.xpose.msra.mxu0 0.0
  %730 = vmatpush.xpose.msra.mxu0 %v713
  %731 = vmatmul.f32.gmra.mxu0 %v711
  %v732 = vpop.f32.mrf.mxu0
  %v733 = vadd.f32 0.0, %v732
  %734 = vdwg.mxu0
  %v735 = vmul.f32 %v705, 0.35355338
  %v736 = vmul.f32 %v733, 0.35355338
  %v737 = vsel %vm198, %v735, -inf
  %738 = vmax.xlane.f32.xlu0 %v737
  %v739 = vpop.xlane.xlu0 %738
  %v740 = vsel %vm198, %v736, -inf
  %741 = vmax.xlane.f32.xlu0 %v740
  %v742 = vpop.xlane.xlu0 %741
  %v743 = vsub.f32 %v735, %v739
  %v744 = vsub.f32 %v736, %v742
  %v745 = vmul.f32 %v743, 1.442695
  %v746 = vpow.pop %v745
  %v747 = vmul.f32 %v744, 1.442695
  %v748 = vpow.pop %v747
  %v749 = vsel %vm198, %v746, 0.0
  %750 = vadd.xlane.f32.xlu0 %v749
  %v751 = vpop.xlane.xlu0 %750
  %v752 = vsel %vm198, %v748, 0.0
  %753 = vadd.xlane.f32.xlu0 %v752
  %v754 = vpop.xlane.xlu0 %753
  %v755 = vrcp.pop %v751
  %v756 = vrcp.pop %v754
  %v757 = vmul.f32 %v746, %v755
  %v758 = vmul.f32 %v748, %v756
  %759 = vrot.lane.b32.xlu0 %v187, 104
  %v760 = vpop.permute.xlu0 %759
  %v763 = vsel %vm198, %v757, 0
  %765 = vmatpush.msra.mxu0 0.0
  %766 = vmatpush.msra.mxu0 0.0
  %767 = vmatpush.msra.mxu0 0.0
  %768 = vmatpush.msra.mxu0 0.0
  %769 = vmatpush.msra.mxu0 0.0
  %770 = vmatpush.msra.mxu0 0.0
  %771 = vmatpush.msra.mxu0 0.0
  %772 = vmatpush.msra.mxu0 0.0
  %773 = vmatpush.msra.mxu0 0.0
  %774 = vmatpush.msra.mxu0 0.0
  %775 = vmatpush.msra.mxu0 0.0
  %776 = vmatpush.msra.mxu0 0.0
  %777 = vmatpush.msra.mxu0 0.0
  %778 = vmatpush.msra.mxu0 0.0
  %779 = vmatpush.msra.mxu0 0.0
  %780 = vmatpush.msra.mxu0 %v760
  %781 = vmatmul.f32.gmra.mxu0 %v763
  %v782 = vpop.f32.mrf.mxu0
  %v783 = vadd.f32 0.0, %v782
  %784 = vdwg.mxu0
  %785 = vrot.lane.b32.xlu0 %v190, 104
  %v786 = vpop.permute.xlu0 %785
  %v789 = vsel %vm198, %v758, 0
  %791 = vmatpush.msra.mxu0 0.0
  %792 = vmatpush.msra.mxu0 0.0
  %793 = vmatpush.msra.mxu0 0.0
  %794 = vmatpush.msra.mxu0 0.0
  %795 = vmatpush.msra.mxu0 0.0
  %796 = vmatpush.msra.mxu0 0.0
  %797 = vmatpush.msra.mxu0 0.0
  %798 = vmatpush.msra.mxu0 0.0
  %799 = vmatpush.msra.mxu0 0.0
  %800 = vmatpush.msra.mxu0 0.0
  %801 = vmatpush.msra.mxu0 0.0
  %802 = vmatpush.msra.mxu0 0.0
  %803 = vmatpush.msra.mxu0 0.0
  %804 = vmatpush.msra.mxu0 0.0
  %805 = vmatpush.msra.mxu0 0.0
  %806 = vmatpush.msra.mxu0 %v786
  %807 = vmatmul.f32.gmra.mxu0 %v789
  %v808 = vpop.f32.mrf.mxu0
  %v809 = vadd.f32 0.0, %v808
  %810 = vdwg.mxu0
  %v812 = vsel %vm198, %v783, 0
  %v815 = vsel %vm198, %v809, 0
  %817 = vmatpush.msra.mxu0 0.0
  %818 = vmatpush.msra.mxu0 0.0
  %819 = vmatpush.msra.mxu0 0.0
  %820 = vmatpush.msra.mxu0 0.0
  %821 = vmatpush.msra.mxu0 0.0
  %822 = vmatpush.msra.mxu0 0.0
  %823 = vmatpush.msra.mxu0 0.0
  %824 = vmatpush.msra.mxu0 0.0
  %825 = vmatpush.msra.mxu0 0.0
  %826 = vmatpush.msra.mxu0 0.0
  %827 = vmatpush.msra.mxu0 0.0
  %828 = vmatpush.msra.mxu0 0.0
  %829 = vmatpush.msra.mxu0 0.0
  %830 = vmatpush.msra.mxu0 0.0
  %831 = vmatpush.msra.mxu0 0.0
  %832 = vmatpush.msra.mxu0 %v109
  %833 = vmatmul.f32.gmra.mxu0 %v812
  %v834 = vpop.f32.mrf.mxu0
  %v835 = vadd.f32 0.0, %v834
  %836 = vmatmul.f32.gmra.mxu0 %v815
  %v837 = vpop.f32.mrf.mxu0
  %v838 = vadd.f32 0.0, %v837
  %839 = vdwg.mxu0
  %v840 = vadd.f32 %v677, %v835
  %v841 = vadd.f32 %v678, %v838
  %v842 = vadd.f32 %v56, %v840
  %v843 = vadd.f32 %v57, %v841
  %v844 = vsel %vm114, %v842, 0.0
  %845 = vadd.xlane.f32.xlu0 %v844
  %v846 = vpop.xlane.xlu0 %845
  %v847 = vsel %vm114, %v843, 0.0
  %848 = vadd.xlane.f32.xlu0 %v847
  %v849 = vpop.xlane.xlu0 %848
  %v850 = vrcp.pop 32.0
  %v851 = vmul.f32 32.0, %v850
  %v852 = vsub.f32 1.0, %v851
  %v853 = vmul.f32 %v850, %v852
  %v854 = vadd.f32 %v850, %v853
  %vm855 = vweird.f32 %v850
  %v856 = vsel %vm855, %v850, %v854
  %v857 = vmul.f32 %v846, %v856
  %v858 = vmul.f32 %v849, %v856
  %v859 = vsub.f32 %v842, %v857
  %v860 = vsub.f32 %v843, %v858
  %v861 = vmul.f32 %v859, %v859
  %v862 = vmul.f32 %v860, %v860
  %v863 = vsel %vm114, %v861, 0.0
  %864 = vadd.xlane.f32.xlu0 %v863
  %v865 = vpop.xlane.xlu0 %864
  %v866 = vsel %vm114, %v862, 0.0
  %867 = vadd.xlane.f32.xlu0 %v866
  %v868 = vpop.xlane.xlu0 %867
  %v869 = vmul.f32 %v865, %v856
  %v870 = vmul.f32 %v868, %v856
  %v871 = vadd.f32 %v869, 1e-05
  %v872 = vadd.f32 %v870, 1e-05
  %v873 = vrsqrt.pop %v871
  %v874 = vmul.f32 %v873, %v871
  %v875 = vmul.f32 %v874, %v873
  %v876 = vmul.f32 0.5, %v875
  %v877 = vsub.f32 1.5, %v876
  %v878 = vmul.f32 %v873, %v877
  %vm879 = vweird.f32 %v871
  %vm880 = vweird.f32 %v873
  %vm881 = vmor %vm879, %vm880
  %v882 = vsel %vm881, %v873, %v878
  %v883 = vrsqrt.pop %v872
  %v884 = vmul.f32 %v883, %v872
  %v885 = vmul.f32 %v884, %v883
  %v886 = vmul.f32 0.5, %v885
  %v887 = vsub.f32 1.5, %v886
  %v888 = vmul.f32 %v883, %v887
  %vm889 = vweird.f32 %v872
  %vm890 = vweird.f32 %v883
  %vm891 = vmor %vm889, %vm890
  %v892 = vsel %vm891, %v883, %v888
  %v893 = vmul.f32 %v859, %v882
  %v894 = vmul.f32 %v860, %v892
  %v895 = vperm.slane %v98, 0
  %v896 = vmul.f32 %v893, %v895
  %v897 = vmul.f32 %v894, %v895
  %v898 = vperm.slane %v98, 1
  %v899 = vadd.f32 %v896, %v898
  %v900 = vadd.f32 %v897, %v898
  %v901 = vadd.f32 %v899, %v58
  %v902 = vadd.f32 %v900, %v59
  %v903 = vadd.f32 %v60, %v80
  %v904 = vadd.f32 %v68, %v86
  %v905 = vadd.f32 %v69, %v87
  %v906 = vadd.f32 %v70, %v88
  %v907 = vadd.f32 %v61, %v81
  %v908 = vadd.f32 %v62, %v82
  %v909 = vadd.f32 %v71, %v89
  %v910 = vadd.f32 %v72, %v90
  %v911 = vadd.f32 %v73, %v91
  %v912 = vadd.f32 %v63, %v83
  %v913 = vld [vmem:[%s8] sm:$0xff]
  %v914 = vld [vmem:[%s8 + $0x8] sm:$0xff]
  %v915 = vld [vmem:[%s8 + $0x10] sm:$0xff]
  %v916 = vld [vmem:[%s8 + $0x18] sm:$0xff]
  %v917 = vld [vmem:[%s9] sm:$0x1]
  %v918 = vld [vmem:[%s10] sm:$0xff]
  %v919 = vld [vmem:[%s10 + $0x8] sm:$0xff]
  %v920 = vld [vmem:[%s10 + $0x10] sm:$0xff]
  %v921 = vld [vmem:[%s10 + $0x18] sm:$0xff]
  %v922 = vld [vmem:[%s11] sm:$0x1]
  %v924 = vperm.slane %v917, 0
  %v927 = vsel %vm114, %v901, 0
  %v930 = vsel %vm114, %v902, 0
  %932 = vmatpush.msra.mxu0 0.0
  %933 = vmatpush.msra.mxu0 0.0
  %934 = vmatpush.msra.mxu0 0.0
  %935 = vmatpush.msra.mxu0 0.0
  %936 = vmatpush.msra.mxu0 0.0
  %937 = vmatpush.msra.mxu0 0.0
  %938 = vmatpush.msra.mxu0 0.0
  %939 = vmatpush.msra.mxu0 0.0
  %940 = vmatpush.msra.mxu0 0.0
  %941 = vmatpush.msra.mxu0 0.0
  %942 = vmatpush.msra.mxu0 0.0
  %943 = vmatpush.msra.mxu0 0.0
  %944 = vmatpush.msra.mxu0 %v916
  %945 = vmatpush.msra.mxu0 %v915
  %946 = vmatpush.msra.mxu0 %v914
  %947 = vmatpush.msra.mxu0 %v913
  %948 = vmatmul.f32.gmra.mxu0 %v927
  %v949 = vpop.f32.mrf.mxu0
  %v950 = vadd.f32 %v924, %v949
  %951 = vmatmul.f32.gmra.mxu0 %v930
  %v952 = vpop.f32.mrf.mxu0
  %v953 = vadd.f32 %v924, %v952
  %954 = vdwg.mxu0
  %965 = vst [vmem:[#allocation1] ss:$4 sm:$0xff] %v903
  %s966 = scalar_lea.vmem [#allocation1], 1
  %967 = vst [vmem:[%s966] ss:$4 sm:$0xff] %v904
  %s968 = scalar_lea.vmem [#allocation1], 2
  %969 = vst [vmem:[%s968] ss:$4 sm:$0xff] %v905
  %s970 = scalar_lea.vmem [#allocation1], 3
  %971 = vst [vmem:[%s970] ss:$4 sm:$0xff] %v906
  %s972 = scalar_lea.vmem [#allocation1], 32
  %973 = vst [vmem:[%s972] ss:$4 sm:$0xff] %v907
  %s974 = scalar_lea.vmem [#allocation1], 33
  %975 = vst [vmem:[%s974] ss:$4 sm:$0xff] %v908
  %s976 = scalar_lea.vmem [#allocation1], 34
  %977 = vst [vmem:[%s976] ss:$4 sm:$0xff] %v909
  %s978 = scalar_lea.vmem [#allocation1], 35
  %979 = vst [vmem:[%s978] ss:$4 sm:$0xff] %v910
  %v980 = vld.sshfl [vmem:[#allocation1] sm:$0xff pattern:$0x73625140]
  %v981 = vld.sshfl [vmem:[#allocation1 + $0x20] sm:$0xff pattern:$0x73625140]
  %982 = vst [vmem:[#allocation1] ss:$4 sm:$0xff] %v911
  %983 = vst [vmem:[%s966] ss:$4 sm:$0xff] %v912
  %v984 = vld.sshfl [vmem:[#allocation1] sm:$0xff pattern:$0x73625140]
  %989 = vrot.lane.b32.xlu0 %v913, 96
  %v990 = vpop.permute.xlu0 %989
  %991 = vrot.lane.b32.xlu0 %v914, 96
  %v992 = vpop.permute.xlu0 %991
  %993 = vrot.lane.b32.xlu0 %v915, 96
  %v994 = vpop.permute.xlu0 %993
  %995 = vrot.lane.b32.xlu0 %v916, 96
  %v996 = vpop.permute.xlu0 %995
  %1001 = vrot.lane.b32.xlu0 %v924, 96
  %v1002 = vpop.permute.xlu0 %1001
  %v1004 = vsel %vm114, %v980, 0
  %v1006 = vsel %vm114, %v981, 0
  %v1008 = vsel %vm114, %v984, 0
  %1010 = vmatpush.msra.mxu0 0.0
  %1011 = vmatpush.msra.mxu0 0.0
  %1012 = vmatpush.msra.mxu0 0.0
  %1013 = vmatpush.msra.mxu0 0.0
  %1014 = vmatpush.msra.mxu0 0.0
  %1015 = vmatpush.msra.mxu0 0.0
  %1016 = vmatpush.msra.mxu0 0.0
  %1017 = vmatpush.msra.mxu0 0.0
  %1018 = vmatpush.msra.mxu0 0.0
  %1019 = vmatpush.msra.mxu0 0.0
  %1020 = vmatpush.msra.mxu0 0.0
  %1021 = vmatpush.msra.mxu0 0.0
  %1022 = vmatpush.msra.mxu0 %v996
  %1023 = vmatpush.msra.mxu0 %v994
  %1024 = vmatpush.msra.mxu0 %v992
  %1025 = vmatpush.msra.mxu0 %v990
  %1026 = vmatmul.f32.gmra.mxu0 %v1004
  %v1027 = vpop.f32.mrf.mxu0
  %v1028 = vadd.f32 %v1002, %v1027
  %1029 = vmatmul.f32.gmra.mxu0 %v1006
  %v1030 = vpop.f32.mrf.mxu0
  %v1031 = vadd.f32 %v1002, %v1030
  %1032 = vmatmul.f32.gmra.mxu0 %v1008
  %v1033 = vpop.f32.mrf.mxu0
  %v1034 = vadd.f32 %v1002, %v1033
  %1035 = vdwg.mxu0
  %1036 = vst [vmem:[#allocation1] ss:$4 sm:$0xff] %v60
  %s1037 = scalar_lea.vmem [#allocation1], 1
  %1038 = vst [vmem:[%s1037] ss:$4 sm:$0xff] %v68
  %s1039 = scalar_lea.vmem [#allocation1], 2
  %1040 = vst [vmem:[%s1039] ss:$4 sm:$0xff] %v69
  %s1041 = scalar_lea.vmem [#allocation1], 3
  %1042 = vst [vmem:[%s1041] ss:$4 sm:$0xff] %v70
  %s1043 = scalar_lea.vmem [#allocation1], 32
  %1044 = vst [vmem:[%s1043] ss:$4 sm:$0xff] %v61
  %s1045 = scalar_lea.vmem [#allocation1], 33
  %1046 = vst [vmem:[%s1045] ss:$4 sm:$0xff] %v62
  %s1047 = scalar_lea.vmem [#allocation1], 34
  %1048 = vst [vmem:[%s1047] ss:$4 sm:$0xff] %v71
  %s1049 = scalar_lea.vmem [#allocation1], 35
  %1050 = vst [vmem:[%s1049] ss:$4 sm:$0xff] %v72
  %v1051 = vld.sshfl [vmem:[#allocation1] sm:$0xff pattern:$0x73625140]
  %v1052 = vld.sshfl [vmem:[#allocation1 + $0x20] sm:$0xff pattern:$0x73625140]
  %1053 = vst [vmem:[#allocation1] ss:$4 sm:$0xff] %v73
  %1054 = vst [vmem:[%s1037] ss:$4 sm:$0xff] %v63
  %v1055 = vld.sshfl [vmem:[#allocation1] sm:$0xff pattern:$0x73625140]
  %1056 = vrot.lane.b32.xlu0 %v913, 64
  %v1057 = vpop.permute.xlu0 %1056
  %1058 = vrot.lane.b32.xlu0 %v914, 64
  %v1059 = vpop.permute.xlu0 %1058
  %1060 = vrot.lane.b32.xlu0 %v915, 64
  %v1061 = vpop.permute.xlu0 %1060
  %1062 = vrot.lane.b32.xlu0 %v916, 64
  %v1063 = vpop.permute.xlu0 %1062
  %1068 = vrot.lane.b32.xlu0 %v924, 64
  %v1069 = vpop.permute.xlu0 %1068
  %v1071 = vsel %vm114, %v1051, 0
  %v1073 = vsel %vm114, %v1052, 0
  %v1075 = vsel %vm114, %v1055, 0
  %1077 = vmatpush.msra.mxu0 0.0
  %1078 = vmatpush.msra.mxu0 0.0
  %1079 = vmatpush.msra.mxu0 0.0
  %1080 = vmatpush.msra.mxu0 0.0
  %1081 = vmatpush.msra.mxu0 0.0
  %1082 = vmatpush.msra.mxu0 0.0
  %1083 = vmatpush.msra.mxu0 0.0
  %1084 = vmatpush.msra.mxu0 0.0
  %1085 = vmatpush.msra.mxu0 0.0
  %1086 = vmatpush.msra.mxu0 0.0
  %1087 = vmatpush.msra.mxu0 0.0
  %1088 = vmatpush.msra.mxu0 0.0
  %1089 = vmatpush.msra.mxu0 %v1063
  %1090 = vmatpush.msra.mxu0 %v1061
  %1091 = vmatpush.msra.mxu0 %v1059
  %1092 = vmatpush.msra.mxu0 %v1057
  %1093 = vmatmul.f32.gmra.mxu0 %v1071
  %v1094 = vpop.f32.mrf.mxu0
  %v1095 = vadd.f32 %v1069, %v1094
  %1096 = vmatmul.f32.gmra.mxu0 %v1073
  %v1097 = vpop.f32.mrf.mxu0
  %v1098 = vadd.f32 %v1069, %v1097
  %1099 = vmatmul.f32.gmra.mxu0 %v1075
  %v1100 = vpop.f32.mrf.mxu0
  %v1101 = vadd.f32 %v1069, %v1100
  %1102 = vdwg.mxu0
  %v1106 = vrot.slane %v1028, 2
  %v1107 = vrot.slane %v1028, 4
  %v1108 = vrot.slane %v1028, 6
  %v1109 = vrot.slane %v1031, 2
  %v1110 = vrot.slane %v1031, 4
  %v1111 = vrot.slane %v1031, 6
  %v1112 = vrot.slane %v1034, 2
  %v1116 = vrot.slane %v1095, 2
  %v1117 = vrot.slane %v1095, 4
  %v1118 = vrot.slane %v1095, 6
  %v1119 = vrot.slane %v1098, 2
  %v1120 = vrot.slane %v1098, 4
  %v1121 = vrot.slane %v1098, 6
  %v1122 = vrot.slane %v1101, 2
  %v1124 = vperm.slane %v922, 0
  %1126 = vst [vmem:[#allocation1] ss:$4 sm:$0xff] %v1028
  %s1127 = scalar_lea.vmem [#allocation1], 1
  %1128 = vst [vmem:[%s1127] ss:$4 sm:$0xff] %v1106
  %s1129 = scalar_lea.vmem [#allocation1], 2
  %1130 = vst [vmem:[%s1129] ss:$4 sm:$0xff] %v1107
  %s1131 = scalar_lea.vmem [#allocation1], 3
  %1132 = vst [vmem:[%s1131] ss:$4 sm:$0xff] %v1108
  %s1133 = scalar_lea.vmem [#allocation1], 32
  %1134 = vst [vmem:[%s1133] ss:$4 sm:$0xff] %v1031
  %v1135 = vld.sshfl [vmem:[#allocation1] sm:$0xff pattern:$0x73625140]
  %v1136 = vld.sshfl [vmem:[#allocation1 + $0x20] sm:$0xff pattern:$0x73625140]
  %v1138 = vsel %vm198, %v950, 0
  %v1140 = vsel %vm198, %v1135, 0
  %v1142 = vsel %vm198, %v1136, 0
  %1144 = vmatpush.xpose.msra.mxu0 0.0
  %1145 = vmatpush.xpose.msra.mxu0 0.0
  %1146 = vmatpush.xpose.msra.mxu0 0.0
  %1147 = vmatpush.xpose.msra.mxu0 0.0
  %1148 = vmatpush.xpose.msra.mxu0 0.0
  %1149 = vmatpush.xpose.msra.mxu0 0.0
  %1150 = vmatpush.xpose.msra.mxu0 0.0
  %1151 = vmatpush.xpose.msra.mxu0 0.0
  %1152 = vmatpush.xpose.msra.mxu0 0.0
  %1153 = vmatpush.xpose.msra.mxu0 0.0
  %1154 = vmatpush.xpose.msra.mxu0 0.0
  %1155 = vmatpush.xpose.msra.mxu0 0.0
  %1156 = vmatpush.xpose.msra.mxu0 0.0
  %1157 = vmatpush.xpose.msra.mxu0 0.0
  %1158 = vmatpush.xpose.msra.mxu0 %v1142
  %1159 = vmatpush.xpose.msra.mxu0 %v1140
  %1160 = vmatmul.f32.gmra.mxu0 %v1138
  %v1161 = vpop.f32.mrf.mxu0
  %v1162 = vadd.f32 0.0, %v1161
  %1163 = vdwg.mxu0
  %1164 = vst [vmem:[#allocation1] ss:$4 sm:$0xff] %v1109
  %s1165 = scalar_lea.vmem [#allocation1], 1
  %1166 = vst [vmem:[%s1165] ss:$4 sm:$0xff] %v1110
  %s1167 = scalar_lea.vmem [#allocation1], 2
  %1168 = vst [vmem:[%s1167] ss:$4 sm:$0xff] %v1111
  %s1169 = scalar_lea.vmem [#allocation1], 3
  %1170 = vst [vmem:[%s1169] ss:$4 sm:$0xff] %v1034
  %s1171 = scalar_lea.vmem [#allocation1], 32
  %1172 = vst [vmem:[%s1171] ss:$4 sm:$0xff] %v1112
  %v1173 = vld.sshfl [vmem:[#allocation1] sm:$0xff pattern:$0x73625140]
  %v1174 = vld.sshfl [vmem:[#allocation1 + $0x20] sm:$0xff pattern:$0x73625140]
  %v1176 = vsel %vm198, %v953, 0
  %v1178 = vsel %vm198, %v1173, 0
  %v1180 = vsel %vm198, %v1174, 0
  %1182 = vmatpush.xpose.msra.mxu0 0.0
  %1183 = vmatpush.xpose.msra.mxu0 0.0
  %1184 = vmatpush.xpose.msra.mxu0 0.0
  %1185 = vmatpush.xpose.msra.mxu0 0.0
  %1186 = vmatpush.xpose.msra.mxu0 0.0
  %1187 = vmatpush.xpose.msra.mxu0 0.0
  %1188 = vmatpush.xpose.msra.mxu0 0.0
  %1189 = vmatpush.xpose.msra.mxu0 0.0
  %1190 = vmatpush.xpose.msra.mxu0 0.0
  %1191 = vmatpush.xpose.msra.mxu0 0.0
  %1192 = vmatpush.xpose.msra.mxu0 0.0
  %1193 = vmatpush.xpose.msra.mxu0 0.0
  %1194 = vmatpush.xpose.msra.mxu0 0.0
  %1195 = vmatpush.xpose.msra.mxu0 0.0
  %1196 = vmatpush.xpose.msra.mxu0 %v1180
  %1197 = vmatpush.xpose.msra.mxu0 %v1178
  %1198 = vmatmul.f32.gmra.mxu0 %v1176
  %v1199 = vpop.f32.mrf.mxu0
  %v1200 = vadd.f32 0.0, %v1199
  %1201 = vdwg.mxu0
  %v1202 = vmul.f32 %v1162, 0.35355338
  %v1203 = vmul.f32 %v1200, 0.35355338
  %vm1204 = vcmask 80896
  %v1205 = vsel %vm1204, %v1202, -inf
  %1206 = vmax.xlane.f32.xlu0 %v1205
  %v1207 = vpop.xlane.xlu0 %1206
  %v1208 = vsel %vm1204, %v1203, -inf
  %1209 = vmax.xlane.f32.xlu0 %v1208
  %v1210 = vpop.xlane.xlu0 %1209
  %v1211 = vsub.f32 %v1202, %v1207
  %v1212 = vsub.f32 %v1203, %v1210
  %v1213 = vmul.f32 %v1211, 1.442695
  %v1214 = vpow.pop %v1213
  %v1215 = vmul.f32 %v1212, 1.442695
  %v1216 = vpow.pop %v1215
  %v1217 = vsel %vm1204, %v1214, 0.0
  %1218 = vadd.xlane.f32.xlu0 %v1217
  %v1219 = vpop.xlane.xlu0 %1218
  %v1220 = vsel %vm1204, %v1216, 0.0
  %1221 = vadd.xlane.f32.xlu0 %v1220
  %v1222 = vpop.xlane.xlu0 %1221
  %v1223 = vrcp.pop %v1219
  %v1224 = vrcp.pop %v1222
  %v1225 = vmul.f32 %v1214, %v1223
  %v1226 = vmul.f32 %v1216, %v1224
  %1227 = vst [vmem:[#allocation1] ss:$4 sm:$0xff] %v1095
  %s1228 = scalar_lea.vmem [#allocation1], 1
  %1229 = vst [vmem:[%s1228] ss:$4 sm:$0xff] %v1116
  %s1230 = scalar_lea.vmem [#allocation1], 2
  %1231 = vst [vmem:[%s1230] ss:$4 sm:$0xff] %v1117
  %s1232 = scalar_lea.vmem [#allocation1], 3
  %1233 = vst [vmem:[%s1232] ss:$4 sm:$0xff] %v1118
  %s1234 = scalar_lea.vmem [#allocation1], 32
  %1235 = vst [vmem:[%s1234] ss:$4 sm:$0xff] %v1098
  %v1236 = vld.sshfl [vmem:[#allocation1] sm:$0xff pattern:$0x73625140]
  %v1237 = vld.sshfl [vmem:[#allocation1 + $0x20] sm:$0xff pattern:$0x73625140]
  %v1240 = vsel %vm1204, %v1225, 0
  %vm1242 = vcmask 1041408
  %v1243 = vsel %vm1242, %v1237, 0
  %1245 = vmatpush.msra.mxu0 0.0
  %1246 = vmatpush.msra.mxu0 0.0
  %1247 = vmatpush.msra.mxu0 0.0
  %1248 = vmatpush.msra.mxu0 0.0
  %1249 = vmatpush.msra.mxu0 0.0
  %1250 = vmatpush.msra.mxu0 0.0
  %1251 = vmatpush.msra.mxu0 0.0
  %1252 = vmatpush.msra.mxu0 0.0
  %1253 = vmatpush.msra.mxu0 0.0
  %1254 = vmatpush.msra.mxu0 0.0
  %1255 = vmatpush.msra.mxu0 0.0
  %1256 = vmatpush.msra.mxu0 0.0
  %1257 = vmatpush.msra.mxu0 0.0
  %1258 = vmatpush.msra.mxu0 0.0
  %1259 = vmatpush.msra.mxu0 %v1243
  %1260 = vmatpush.msra.mxu0 %v1236
  %1261 = vmatmul.f32.gmra.mxu0 %v1240
  %v1262 = vpop.f32.mrf.mxu0
  %v1263 = vadd.f32 0.0, %v1262
  %1264 = vdwg.mxu0
  %1265 = vst [vmem:[#allocation1] ss:$4 sm:$0xff] %v1119
  %s1266 = scalar_lea.vmem [#allocation1], 1
  %1267 = vst [vmem:[%s1266] ss:$4 sm:$0xff] %v1120
  %s1268 = scalar_lea.vmem [#allocation1], 2
  %1269 = vst [vmem:[%s1268] ss:$4 sm:$0xff] %v1121
  %s1270 = scalar_lea.vmem [#allocation1], 3
  %1271 = vst [vmem:[%s1270] ss:$4 sm:$0xff] %v1101
  %s1272 = scalar_lea.vmem [#allocation1], 32
  %1273 = vst [vmem:[%s1272] ss:$4 sm:$0xff] %v1122
  %v1274 = vld.sshfl [vmem:[#allocation1] sm:$0xff pattern:$0x73625140]
  %v1275 = vld.sshfl [vmem:[#allocation1 + $0x20] sm:$0xff pattern:$0x73625140]
  %v1278 = vsel %vm1204, %v1226, 0
  %v1280 = vsel %vm1242, %v1275, 0
  %1282 = vmatpush.msra.mxu0 0.0
  %1283 = vmatpush.msra.mxu0 0.0
  %1284 = vmatpush.msra.mxu0 0.0
  %1285 = vmatpush.msra.mxu0 0.0
  %1286 = vmatpush.msra.mxu0 0.0
  %1287 = vmatpush.msra.mxu0 0.0
  %1288 = vmatpush.msra.mxu0 0.0
  %1289 = vmatpush.msra.mxu0 0.0
  %1290 = vmatpush.msra.mxu0 0.0
  %1291 = vmatpush.msra.mxu0 0.0
  %1292 = vmatpush.msra.mxu0 0.0
  %1293 = vmatpush.msra.mxu0 0.0
  %1294 = vmatpush.msra.mxu0 0.0
  %1295 = vmatpush.msra.mxu0 0.0
  %1296 = vmatpush.msra.mxu0 %v1280
  %1297 = vmatpush.msra.mxu0 %v1274
  %1298 = vmatmul.f32.gmra.mxu0 %v1278
  %v1299 = vpop.f32.mrf.mxu0
  %v1300 = vadd.f32 0.0, %v1299
  %1301 = vdwg.mxu0
  %v1303 = vsel %vm198, %v1263, 0
  %v1306 = vsel %vm198, %v1300, 0
  %1308 = vmatpush.msra.mxu0 0.0
  %1309 = vmatpush.msra.mxu0 0.0
  %1310 = vmatpush.msra.mxu0 0.0
  %1311 = vmatpush.msra.mxu0 0.0
  %1312 = vmatpush.msra.mxu0 0.0
  %1313 = vmatpush.msra.mxu0 0.0
  %1314 = vmatpush.msra.mxu0 0.0
  %1315 = vmatpush.msra.mxu0 0.0
  %1316 = vmatpush.msra.mxu0 0.0
  %1317 = vmatpush.msra.mxu0 0.0
  %1318 = vmatpush.msra.mxu0 0.0
  %1319 = vmatpush.msra.mxu0 0.0
  %1320 = vmatpush.msra.mxu0 0.0
  %1321 = vmatpush.msra.mxu0 0.0
  %1322 = vmatpush.msra.mxu0 0.0
  %1323 = vmatpush.msra.mxu0 %v918
  %1324 = vmatmul.f32.gmra.mxu0 %v1303
  %v1325 = vpop.f32.mrf.mxu0
  %v1326 = vadd.f32 0.0, %v1325
  %1327 = vmatmul.f32.gmra.mxu0 %v1306
  %v1328 = vpop.f32.mrf.mxu0
  %v1329 = vadd.f32 0.0, %v1328
  %1330 = vdwg.mxu0
  %v1331 = vadd.f32 %v1124, %v1326
  %v1332 = vadd.f32 %v1124, %v1329
  %1333 = vrot.lane.b32.xlu0 %v950, 120
  %v1334 = vpop.permute.xlu0 %1333
  %1335 = vst [vmem:[#allocation1] ss:$4 sm:$0xff] %v1028
  %s1336 = scalar_lea.vmem [#allocation1], 1
  %1337 = vst [vmem:[%s1336] ss:$4 sm:$0xff] %v1106
  %s1338 = scalar_lea.vmem [#allocation1], 2
  %1339 = vst [vmem:[%s1338] ss:$4 sm:$0xff] %v1107
  %s1340 = scalar_lea.vmem [#allocation1], 3
  %1341 = vst [vmem:[%s1340] ss:$4 sm:$0xff] %v1108
  %s1342 = scalar_lea.vmem [#allocation1], 32
  %1343 = vst [vmem:[%s1342] ss:$4 sm:$0xff] %v1031
  %v1344 = vld.sshfl [vmem:[#allocation1] sm:$0xff pattern:$0x73625140]
  %v1345 = vld.sshfl [vmem:[#allocation1 + $0x20] sm:$0xff pattern:$0x73625140]
  %1346 = vrot.lane.b32.xlu0 %v1344, 120
  %v1347 = vpop.permute.xlu0 %1346
  %1348 = vrot.lane.b32.xlu0 %v1345, 120
  %v1349 = vpop.permute.xlu0 %1348
  %v1350 = vsel %vm198, %v1334, 0
  %v1352 = vsel %vm198, %v1347, 0
  %v1354 = vsel %vm198, %v1349, 0
  %1356 = vmatpush.xpose.msra.mxu0 0.0
  %1357 = vmatpush.xpose.msra.mxu0 0.0
  %1358 = vmatpush.xpose.msra.mxu0 0.0
  %1359 = vmatpush.xpose.msra.mxu0 0.0
  %1360 = vmatpush.xpose.msra.mxu0 0.0
  %1361 = vmatpush.xpose.msra.mxu0 0.0
  %1362 = vmatpush.xpose.msra.mxu0 0.0
  %1363 = vmatpush.xpose.msra.mxu0 0.0
  %1364 = vmatpush.xpose.msra.mxu0 0.0
  %1365 = vmatpush.xpose.msra.mxu0 0.0
  %1366 = vmatpush.xpose.msra.mxu0 0.0
  %1367 = vmatpush.xpose.msra.mxu0 0.0
  %1368 = vmatpush.xpose.msra.mxu0 0.0
  %1369 = vmatpush.xpose.msra.mxu0 0.0
  %1370 = vmatpush.xpose.msra.mxu0 %v1354
  %1371 = vmatpush.xpose.msra.mxu0 %v1352
  %1372 = vmatmul.f32.gmra.mxu0 %v1350
  %v1373 = vpop.f32.mrf.mxu0
  %v1374 = vadd.f32 0.0, %v1373
  %1375 = vdwg.mxu0
  %1376 = vrot.lane.b32.xlu0 %v953, 120
  %v1377 = vpop.permute.xlu0 %1376
  %1378 = vst [vmem:[#allocation1] ss:$4 sm:$0xff] %v1109
  %s1379 = scalar_lea.vmem [#allocation1], 1
  %1380 = vst [vmem:[%s1379] ss:$4 sm:$0xff] %v1110
  %s1381 = scalar_lea.vmem [#allocation1], 2
  %1382 = vst [vmem:[%s1381] ss:$4 sm:$0xff] %v1111
  %s1383 = scalar_lea.vmem [#allocation1], 3
  %1384 = vst [vmem:[%s1383] ss:$4 sm:$0xff] %v1034
  %s1385 = scalar_lea.vmem [#allocation1], 32
  %1386 = vst [vmem:[%s1385] ss:$4 sm:$0xff] %v1112
  %v1387 = vld.sshfl [vmem:[#allocation1] sm:$0xff pattern:$0x73625140]
  %v1388 = vld.sshfl [vmem:[#allocation1 + $0x20] sm:$0xff pattern:$0x73625140]
  %1389 = vrot.lane.b32.xlu0 %v1387, 120
  %v1390 = vpop.permute.xlu0 %1389
  %1391 = vrot.lane.b32.xlu0 %v1388, 120
  %v1392 = vpop.permute.xlu0 %1391
  %v1393 = vsel %vm198, %v1377, 0
  %v1395 = vsel %vm198, %v1390, 0
  %v1397 = vsel %vm198, %v1392, 0
  %1399 = vmatpush.xpose.msra.mxu0 0.0
  %1400 = vmatpush.xpose.msra.mxu0 0.0
  %1401 = vmatpush.xpose.msra.mxu0 0.0
  %1402 = vmatpush.xpose.msra.mxu0 0.0
  %1403 = vmatpush.xpose.msra.mxu0 0.0
  %1404 = vmatpush.xpose.msra.mxu0 0.0
  %1405 = vmatpush.xpose.msra.mxu0 0.0
  %1406 = vmatpush.xpose.msra.mxu0 0.0
  %1407 = vmatpush.xpose.msra.mxu0 0.0
  %1408 = vmatpush.xpose.msra.mxu0 0.0
  %1409 = vmatpush.xpose.msra.mxu0 0.0
  %1410 = vmatpush.xpose.msra.mxu0 0.0
  %1411 = vmatpush.xpose.msra.mxu0 0.0
  %1412 = vmatpush.xpose.msra.mxu0 0.0
  %1413 = vmatpush.xpose.msra.mxu0 %v1397
  %1414 = vmatpush.xpose.msra.mxu0 %v1395
  %1415 = vmatmul.f32.gmra.mxu0 %v1393
  %v1416 = vpop.f32.mrf.mxu0
  %v1417 = vadd.f32 0.0, %v1416
  %1418 = vdwg.mxu0
  %v1419 = vmul.f32 %v1374, 0.35355338
  %v1420 = vmul.f32 %v1417, 0.35355338
  %v1421 = vsel %vm1204, %v1419, -inf
  %1422 = vmax.xlane.f32.xlu0 %v1421
  %v1423 = vpop.xlane.xlu0 %1422
  %v1424 = vsel %vm1204, %v1420, -inf
  %1425 = vmax.xlane.f32.xlu0 %v1424
  %v1426 = vpop.xlane.xlu0 %1425
  %v1427 = vsub.f32 %v1419, %v1423
  %v1428 = vsub.f32 %v1420, %v1426
  %v1429 = vmul.f32 %v1427, 1.442695
  %v1430 = vpow.pop %v1429
  %v1431 = vmul.f32 %v1428, 1.442695
  %v1432 = vpow.pop %v1431
  %v1433 = vsel %vm1204, %v1430, 0.0
  %1434 = vadd.xlane.f32.xlu0 %v1433
  %v1435 = vpop.xlane.xlu0 %1434
  %v1436 = vsel %vm1204, %v1432, 0.0
  %1437 = vadd.xlane.f32.xlu0 %v1436
  %v1438 = vpop.xlane.xlu0 %1437
  %v1439 = vrcp.pop %v1435
  %v1440 = vrcp.pop %v1438
  %v1441 = vmul.f32 %v1430, %v1439
  %v1442 = vmul.f32 %v1432, %v1440
  %1443 = vst [vmem:[#allocation1] ss:$4 sm:$0xff] %v1095
  %s1444 = scalar_lea.vmem [#allocation1], 1
  %1445 = vst [vmem:[%s1444] ss:$4 sm:$0xff] %v1116
  %s1446 = scalar_lea.vmem [#allocation1], 2
  %1447 = vst [vmem:[%s1446] ss:$4 sm:$0xff] %v1117
  %s1448 = scalar_lea.vmem [#allocation1], 3
  %1449 = vst [vmem:[%s1448] ss:$4 sm:$0xff] %v1118
  %s1450 = scalar_lea.vmem [#allocation1], 32
  %1451 = vst [vmem:[%s1450] ss:$4 sm:$0xff] %v1098
  %v1452 = vld.sshfl [vmem:[#allocation1] sm:$0xff pattern:$0x73625140]
  %v1453 = vld.sshfl [vmem:[#allocation1 + $0x20] sm:$0xff pattern:$0x73625140]
  %1454 = vrot.lane.b32.xlu0 %v1452, 120
  %v1455 = vpop.permute.xlu0 %1454
  %1456 = vrot.lane.b32.xlu0 %v1453, 120
  %v1457 = vpop.permute.xlu0 %1456
  %v1460 = vsel %vm1204, %v1441, 0
  %v1462 = vsel %vm1242, %v1457, 0
  %1464 = vmatpush.msra.mxu0 0.0
  %1465 = vmatpush.msra.mxu0 0.0
  %1466 = vmatpush.msra.mxu0 0.0
  %1467 = vmatpush.msra.mxu0 0.0
  %1468 = vmatpush.msra.mxu0 0.0
  %1469 = vmatpush.msra.mxu0 0.0
  %1470 = vmatpush.msra.mxu0 0.0
  %1471 = vmatpush.msra.mxu0 0.0
  %1472 = vmatpush.msra.mxu0 0.0
  %1473 = vmatpush.msra.mxu0 0.0
  %1474 = vmatpush.msra.mxu0 0.0
  %1475 = vmatpush.msra.mxu0 0.0
  %1476 = vmatpush.msra.mxu0 0.0
  %1477 = vmatpush.msra.mxu0 0.0
  %1478 = vmatpush.msra.mxu0 %v1462
  %1479 = vmatpush.msra.mxu0 %v1455
  %1480 = vmatmul.f32.gmra.mxu0 %v1460
  %v1481 = vpop.f32.mrf.mxu0
  %v1482 = vadd.f32 0.0, %v1481
  %1483 = vdwg.mxu0
  %1484 = vst [vmem:[#allocation1] ss:$4 sm:$0xff] %v1119
  %s1485 = scalar_lea.vmem [#allocation1], 1
  %1486 = vst [vmem:[%s1485] ss:$4 sm:$0xff] %v1120
  %s1487 = scalar_lea.vmem [#allocation1], 2
  %1488 = vst [vmem:[%s1487] ss:$4 sm:$0xff] %v1121
  %s1489 = scalar_lea.vmem [#allocation1], 3
  %1490 = vst [vmem:[%s1489] ss:$4 sm:$0xff] %v1101
  %s1491 = scalar_lea.vmem [#allocation1], 32
  %1492 = vst [vmem:[%s1491] ss:$4 sm:$0xff] %v1122
  %v1493 = vld.sshfl [vmem:[#allocation1] sm:$0xff pattern:$0x73625140]
  %v1494 = vld.sshfl [vmem:[#allocation1 + $0x20] sm:$0xff pattern:$0x73625140]
  %1495 = vrot.lane.b32.xlu0 %v1493, 120
  %v1496 = vpop.permute.xlu0 %1495
  %1497 = vrot.lane.b32.xlu0 %v1494, 120
  %v1498 = vpop.permute.xlu0 %1497
  %v1501 = vsel %vm1204, %v1442, 0
  %v1503 = vsel %vm1242, %v1498, 0
  %1505 = vmatpush.msra.mxu0 0.0
  %1506 = vmatpush.msra.mxu0 0.0
  %1507 = vmatpush.msra.mxu0 0.0
  %1508 = vmatpush.msra.mxu0 0.0
  %1509 = vmatpush.msra.mxu0 0.0
  %1510 = vmatpush.msra.mxu0 0.0
  %1511 = vmatpush.msra.mxu0 0.0
  %1512 = vmatpush.msra.mxu0 0.0
  %1513 = vmatpush.msra.mxu0 0.0
  %1514 = vmatpush.msra.mxu0 0.0
  %1515 = vmatpush.msra.mxu0 0.0
  %1516 = vmatpush.msra.mxu0 0.0
  %1517 = vmatpush.msra.mxu0 0.0
  %1518 = vmatpush.msra.mxu0 0.0
  %1519 = vmatpush.msra.mxu0 %v1503
  %1520 = vmatpush.msra.mxu0 %v1496
  %1521 = vmatmul.f32.gmra.mxu0 %v1501
  %v1522 = vpop.f32.mrf.mxu0
  %v1523 = vadd.f32 0.0, %v1522
  %1524 = vdwg.mxu0
  %v1526 = vsel %vm198, %v1482, 0
  %v1529 = vsel %vm198, %v1523, 0
  %1531 = vmatpush.msra.mxu0 0.0
  %1532 = vmatpush.msra.mxu0 0.0
  %1533 = vmatpush.msra.mxu0 0.0
  %1534 = vmatpush.msra.mxu0 0.0
  %1535 = vmatpush.msra.mxu0 0.0
  %1536 = vmatpush.msra.mxu0 0.0
  %1537 = vmatpush.msra.mxu0 0.0
  %1538 = vmatpush.msra.mxu0 0.0
  %1539 = vmatpush.msra.mxu0 0.0
  %1540 = vmatpush.msra.mxu0 0.0
  %1541 = vmatpush.msra.mxu0 0.0
  %1542 = vmatpush.msra.mxu0 0.0
  %1543 = vmatpush.msra.mxu0 0.0
  %1544 = vmatpush.msra.mxu0 0.0
  %1545 = vmatpush.msra.mxu0 0.0
  %1546 = vmatpush.msra.mxu0 %v919
  %1547 = vmatmul.f32.gmra.mxu0 %v1526
  %v1548 = vpop.f32.mrf.mxu0
  %v1549 = vadd.f32 0.0, %v1548
  %1550 = vmatmul.f32.gmra.mxu0 %v1529
  %v1551 = vpop.f32.mrf.mxu0
  %v1552 = vadd.f32 0.0, %v1551
  %1553 = vdwg.mxu0
  %v1554 = vadd.f32 %v1331, %v1549
  %v1555 = vadd.f32 %v1332, %v1552
  %1556 = vrot.lane.b32.xlu0 %v950, 112
  %v1557 = vpop.permute.xlu0 %1556
  %1558 = vst [vmem:[#allocation1] ss:$4 sm:$0xff] %v1028
  %s1559 = scalar_lea.vmem [#allocation1], 1
  %1560 = vst [vmem:[%s1559] ss:$4 sm:$0xff] %v1106
  %s1561 = scalar_lea.vmem [#allocation1], 2
  %1562 = vst [vmem:[%s1561] ss:$4 sm:$0xff] %v1107
  %s1563 = scalar_lea.vmem [#allocation1], 3
  %1564 = vst [vmem:[%s1563] ss:$4 sm:$0xff] %v1108
  %s1565 = scalar_lea.vmem [#allocation1], 32
  %1566 = vst [vmem:[%s1565] ss:$4 sm:$0xff] %v1031
  %v1567 = vld.sshfl [vmem:[#allocation1] sm:$0xff pattern:$0x73625140]
  %v1568 = vld.sshfl [vmem:[#allocation1 + $0x20] sm:$0xff pattern:$0x73625140]
  %1569 = vrot.lane.b32.xlu0 %v1567, 112
  %v1570 = vpop.permute.xlu0 %1569
  %1571 = vrot.lane.b32.xlu0 %v1568, 112
  %v1572 = vpop.permute.xlu0 %1571
  %v1573 = vsel %vm198, %v1557, 0
  %v1575 = vsel %vm198, %v1570, 0
  %v1577 = vsel %vm198, %v1572, 0
  %1579 = vmatpush.xpose.msra.mxu0 0.0
  %1580 = vmatpush.xpose.msra.mxu0 0.0
  %1581 = vmatpush.xpose.msra.mxu0 0.0
  %1582 = vmatpush.xpose.msra.mxu0 0.0
  %1583 = vmatpush.xpose.msra.mxu0 0.0
  %1584 = vmatpush.xpose.msra.mxu0 0.0
  %1585 = vmatpush.xpose.msra.mxu0 0.0
  %1586 = vmatpush.xpose.msra.mxu0 0.0
  %1587 = vmatpush.xpose.msra.mxu0 0.0
  %1588 = vmatpush.xpose.msra.mxu0 0.0
  %1589 = vmatpush.xpose.msra.mxu0 0.0
  %1590 = vmatpush.xpose.msra.mxu0 0.0
  %1591 = vmatpush.xpose.msra.mxu0 0.0
  %1592 = vmatpush.xpose.msra.mxu0 0.0
  %1593 = vmatpush.xpose.msra.mxu0 %v1577
  %1594 = vmatpush.xpose.msra.mxu0 %v1575
  %1595 = vmatmul.f32.gmra.mxu0 %v1573
  %v1596 = vpop.f32.mrf.mxu0
  %v1597 = vadd.f32 0.0, %v1596
  %1598 = vdwg.mxu0
  %1599 = vrot.lane.b32.xlu0 %v953, 112
  %v1600 = vpop.permute.xlu0 %1599
  %1601 = vst [vmem:[#allocation1] ss:$4 sm:$0xff] %v1109
  %s1602 = scalar_lea.vmem [#allocation1], 1
  %1603 = vst [vmem:[%s1602] ss:$4 sm:$0xff] %v1110
  %s1604 = scalar_lea.vmem [#allocation1], 2
  %1605 = vst [vmem:[%s1604] ss:$4 sm:$0xff] %v1111
  %s1606 = scalar_lea.vmem [#allocation1], 3
  %1607 = vst [vmem:[%s1606] ss:$4 sm:$0xff] %v1034
  %s1608 = scalar_lea.vmem [#allocation1], 32
  %1609 = vst [vmem:[%s1608] ss:$4 sm:$0xff] %v1112
  %v1610 = vld.sshfl [vmem:[#allocation1] sm:$0xff pattern:$0x73625140]
  %v1611 = vld.sshfl [vmem:[#allocation1 + $0x20] sm:$0xff pattern:$0x73625140]
  %1612 = vrot.lane.b32.xlu0 %v1610, 112
  %v1613 = vpop.permute.xlu0 %1612
  %1614 = vrot.lane.b32.xlu0 %v1611, 112
  %v1615 = vpop.permute.xlu0 %1614
  %v1616 = vsel %vm198, %v1600, 0
  %v1618 = vsel %vm198, %v1613, 0
  %v1620 = vsel %vm198, %v1615, 0
  %1622 = vmatpush.xpose.msra.mxu0 0.0
  %1623 = vmatpush.xpose.msra.mxu0 0.0
  %1624 = vmatpush.xpose.msra.mxu0 0.0
  %1625 = vmatpush.xpose.msra.mxu0 0.0
  %1626 = vmatpush.xpose.msra.mxu0 0.0
  %1627 = vmatpush.xpose.msra.mxu0 0.0
  %1628 = vmatpush.xpose.msra.mxu0 0.0
  %1629 = vmatpush.xpose.msra.mxu0 0.0
  %1630 = vmatpush.xpose.msra.mxu0 0.0
  %1631 = vmatpush.xpose.msra.mxu0 0.0
  %1632 = vmatpush.xpose.msra.mxu0 0.0
  %1633 = vmatpush.xpose.msra.mxu0 0.0
  %1634 = vmatpush.xpose.msra.mxu0 0.0
  %1635 = vmatpush.xpose.msra.mxu0 0.0
  %1636 = vmatpush.xpose.msra.mxu0 %v1620
  %1637 = vmatpush.xpose.msra.mxu0 %v1618
  %1638 = vmatmul.f32.gmra.mxu0 %v1616
  %v1639 = vpop.f32.mrf.mxu0
  %v1640 = vadd.f32 0.0, %v1639
  %1641 = vdwg.mxu0
  %v1642 = vmul.f32 %v1597, 0.35355338
  %v1643 = vmul.f32 %v1640, 0.35355338
  %v1644 = vsel %vm1204, %v1642, -inf
  %1645 = vmax.xlane.f32.xlu0 %v1644
  %v1646 = vpop.xlane.xlu0 %1645
  %v1647 = vsel %vm1204, %v1643, -inf
  %1648 = vmax.xlane.f32.xlu0 %v1647
  %v1649 = vpop.xlane.xlu0 %1648
  %v1650 = vsub.f32 %v1642, %v1646
  %v1651 = vsub.f32 %v1643, %v1649
  %v1652 = vmul.f32 %v1650, 1.442695
  %v1653 = vpow.pop %v1652
  %v1654 = vmul.f32 %v1651, 1.442695
  %v1655 = vpow.pop %v1654
  %v1656 = vsel %vm1204, %v1653, 0.0
  %1657 = vadd.xlane.f32.xlu0 %v1656
  %v1658 = vpop.xlane.xlu0 %1657
  %v1659 = vsel %vm1204, %v1655, 0.0
  %1660 = vadd.xlane.f32.xlu0 %v1659
  %v1661 = vpop.xlane.xlu0 %1660
  %v1662 = vrcp.pop %v1658
  %v1663 = vrcp.pop %v1661
  %v1664 = vmul.f32 %v1653, %v1662
  %v1665 = vmul.f32 %v1655, %v1663
  %1666 = vst [vmem:[#allocation1] ss:$4 sm:$0xff] %v1095
  %s1667 = scalar_lea.vmem [#allocation1], 1
  %1668 = vst [vmem:[%s1667] ss:$4 sm:$0xff] %v1116
  %s1669 = scalar_lea.vmem [#allocation1], 2
  %1670 = vst [vmem:[%s1669] ss:$4 sm:$0xff] %v1117
  %s1671 = scalar_lea.vmem [#allocation1], 3
  %1672 = vst [vmem:[%s1671] ss:$4 sm:$0xff] %v1118
  %s1673 = scalar_lea.vmem [#allocation1], 32
  %1674 = vst [vmem:[%s1673] ss:$4 sm:$0xff] %v1098
  %v1675 = vld.sshfl [vmem:[#allocation1] sm:$0xff pattern:$0x73625140]
  %v1676 = vld.sshfl [vmem:[#allocation1 + $0x20] sm:$0xff pattern:$0x73625140]
  %1677 = vrot.lane.b32.xlu0 %v1675, 112
  %v1678 = vpop.permute.xlu0 %1677
  %1679 = vrot.lane.b32.xlu0 %v1676, 112
  %v1680 = vpop.permute.xlu0 %1679
  %v1683 = vsel %vm1204, %v1664, 0
  %v1685 = vsel %vm1242, %v1680, 0
  %1687 = vmatpush.msra.mxu0 0.0
  %1688 = vmatpush.msra.mxu0 0.0
  %1689 = vmatpush.msra.mxu0 0.0
  %1690 = vmatpush.msra.mxu0 0.0
  %1691 = vmatpush.msra.mxu0 0.0
  %1692 = vmatpush.msra.mxu0 0.0
  %1693 = vmatpush.msra.mxu0 0.0
  %1694 = vmatpush.msra.mxu0 0.0
  %1695 = vmatpush.msra.mxu0 0.0
  %1696 = vmatpush.msra.mxu0 0.0
  %1697 = vmatpush.msra.mxu0 0.0
  %1698 = vmatpush.msra.mxu0 0.0
  %1699 = vmatpush.msra.mxu0 0.0
  %1700 = vmatpush.msra.mxu0 0.0
  %1701 = vmatpush.msra.mxu0 %v1685
  %1702 = vmatpush.msra.mxu0 %v1678
  %1703 = vmatmul.f32.gmra.mxu0 %v1683
  %v1704 = vpop.f32.mrf.mxu0
  %v1705 = vadd.f32 0.0, %v1704
  %1706 = vdwg.mxu0
  %1707 = vst [vmem:[#allocation1] ss:$4 sm:$0xff] %v1119
  %s1708 = scalar_lea.vmem [#allocation1], 1
  %1709 = vst [vmem:[%s1708] ss:$4 sm:$0xff] %v1120
  %s1710 = scalar_lea.vmem [#allocation1], 2
  %1711 = vst [vmem:[%s1710] ss:$4 sm:$0xff] %v1121
  %s1712 = scalar_lea.vmem [#allocation1], 3
  %1713 = vst [vmem:[%s1712] ss:$4 sm:$0xff] %v1101
  %s1714 = scalar_lea.vmem [#allocation1], 32
  %1715 = vst [vmem:[%s1714] ss:$4 sm:$0xff] %v1122
  %v1716 = vld.sshfl [vmem:[#allocation1] sm:$0xff pattern:$0x73625140]
  %v1717 = vld.sshfl [vmem:[#allocation1 + $0x20] sm:$0xff pattern:$0x73625140]
  %1718 = vrot.lane.b32.xlu0 %v1716, 112
  %v1719 = vpop.permute.xlu0 %1718
  %1720 = vrot.lane.b32.xlu0 %v1717, 112
  %v1721 = vpop.permute.xlu0 %1720
  %v1724 = vsel %vm1204, %v1665, 0
  %v1726 = vsel %vm1242, %v1721, 0
  %1728 = vmatpush.msra.mxu0 0.0
  %1729 = vmatpush.msra.mxu0 0.0
  %1730 = vmatpush.msra.mxu0 0.0
  %1731 = vmatpush.msra.mxu0 0.0
  %1732 = vmatpush.msra.mxu0 0.0
  %1733 = vmatpush.msra.mxu0 0.0
  %1734 = vmatpush.msra.mxu0 0.0
  %1735 = vmatpush.msra.mxu0 0.0
  %1736 = vmatpush.msra.mxu0 0.0
  %1737 = vmatpush.msra.mxu0 0.0
  %1738 = vmatpush.msra.mxu0 0.0
  %1739 = vmatpush.msra.mxu0 0.0
  %1740 = vmatpush.msra.mxu0 0.0
  %1741 = vmatpush.msra.mxu0 0.0
  %1742 = vmatpush.msra.mxu0 %v1726
  %1743 = vmatpush.msra.mxu0 %v1719
  %1744 = vmatmul.f32.gmra.mxu0 %v1724
  %v1745 = vpop.f32.mrf.mxu0
  %v1746 = vadd.f32 0.0, %v1745
  %1747 = vdwg.mxu0
  %v1749 = vsel %vm198, %v1705, 0
  %v1752 = vsel %vm198, %v1746, 0
  %1754 = vmatpush.msra.mxu0 0.0
  %1755 = vmatpush.msra.mxu0 0.0
  %1756 = vmatpush.msra.mxu0 0.0
  %1757 = vmatpush.msra.mxu0 0.0
  %1758 = vmatpush.msra.mxu0 0.0
  %1759 = vmatpush.msra.mxu0 0.0
  %1760 = vmatpush.msra.mxu0 0.0
  %1761 = vmatpush.msra.mxu0 0.0
  %1762 = vmatpush.msra.mxu0 0.0
  %1763 = vmatpush.msra.mxu0 0.0
  %1764 = vmatpush.msra.mxu0 0.0
  %1765 = vmatpush.msra.mxu0 0.0
  %1766 = vmatpush.msra.mxu0 0.0
  %1767 = vmatpush.msra.mxu0 0.0
  %1768 = vmatpush.msra.mxu0 0.0
  %1769 = vmatpush.msra.mxu0 %v920
  %1770 = vmatmul.f32.gmra.mxu0 %v1749
  %v1771 = vpop.f32.mrf.mxu0
  %v1772 = vadd.f32 0.0, %v1771
  %1773 = vmatmul.f32.gmra.mxu0 %v1752
  %v1774 = vpop.f32.mrf.mxu0
  %v1775 = vadd.f32 0.0, %v1774
  %1776 = vdwg.mxu0
  %v1777 = vadd.f32 %v1554, %v1772
  %v1778 = vadd.f32 %v1555, %v1775
  %1779 = vrot.lane.b32.xlu0 %v950, 104
  %v1780 = vpop.permute.xlu0 %1779
  %1781 = vst [vmem:[#allocation1] ss:$4 sm:$0xff] %v1028
  %s1782 = scalar_lea.vmem [#allocation1], 1
  %1783 = vst [vmem:[%s1782] ss:$4 sm:$0xff] %v1106
  %s1784 = scalar_lea.vmem [#allocation1], 2
  %1785 = vst [vmem:[%s1784] ss:$4 sm:$0xff] %v1107
  %s1786 = scalar_lea.vmem [#allocation1], 3
  %1787 = vst [vmem:[%s1786] ss:$4 sm:$0xff] %v1108
  %s1788 = scalar_lea.vmem [#allocation1], 32
  %1789 = vst [vmem:[%s1788] ss:$4 sm:$0xff] %v1031
  %v1790 = vld.sshfl [vmem:[#allocation1] sm:$0xff pattern:$0x73625140]
  %v1791 = vld.sshfl [vmem:[#allocation1 + $0x20] sm:$0xff pattern:$0x73625140]
  %1792 = vrot.lane.b32.xlu0 %v1790, 104
  %v1793 = vpop.permute.xlu0 %1792
  %1794 = vrot.lane.b32.xlu0 %v1791, 104
  %v1795 = vpop.permute.xlu0 %1794
  %v1796 = vsel %vm198, %v1780, 0
  %v1798 = vsel %vm198, %v1793, 0
  %v1800 = vsel %vm198, %v1795, 0
  %1802 = vmatpush.xpose.msra.mxu0 0.0
  %1803 = vmatpush.xpose.msra.mxu0 0.0
  %1804 = vmatpush.xpose.msra.mxu0 0.0
  %1805 = vmatpush.xpose.msra.mxu0 0.0
  %1806 = vmatpush.xpose.msra.mxu0 0.0
  %1807 = vmatpush.xpose.msra.mxu0 0.0
  %1808 = vmatpush.xpose.msra.mxu0 0.0
  %1809 = vmatpush.xpose.msra.mxu0 0.0
  %1810 = vmatpush.xpose.msra.mxu0 0.0
  %1811 = vmatpush.xpose.msra.mxu0 0.0
  %1812 = vmatpush.xpose.msra.mxu0 0.0
  %1813 = vmatpush.xpose.msra.mxu0 0.0
  %1814 = vmatpush.xpose.msra.mxu0 0.0
  %1815 = vmatpush.xpose.msra.mxu0 0.0
  %1816 = vmatpush.xpose.msra.mxu0 %v1800
  %1817 = vmatpush.xpose.msra.mxu0 %v1798
  %1818 = vmatmul.f32.gmra.mxu0 %v1796
  %v1819 = vpop.f32.mrf.mxu0
  %v1820 = vadd.f32 0.0, %v1819
  %1821 = vdwg.mxu0
  %1822 = vrot.lane.b32.xlu0 %v953, 104
  %v1823 = vpop.permute.xlu0 %1822
  %1824 = vst [vmem:[#allocation1] ss:$4 sm:$0xff] %v1109
  %s1825 = scalar_lea.vmem [#allocation1], 1
  %1826 = vst [vmem:[%s1825] ss:$4 sm:$0xff] %v1110
  %s1827 = scalar_lea.vmem [#allocation1], 2
  %1828 = vst [vmem:[%s1827] ss:$4 sm:$0xff] %v1111
  %s1829 = scalar_lea.vmem [#allocation1], 3
  %1830 = vst [vmem:[%s1829] ss:$4 sm:$0xff] %v1034
  %s1831 = scalar_lea.vmem [#allocation1], 32
  %1832 = vst [vmem:[%s1831] ss:$4 sm:$0xff] %v1112
  %v1833 = vld.sshfl [vmem:[#allocation1] sm:$0xff pattern:$0x73625140]
  %v1834 = vld.sshfl [vmem:[#allocation1 + $0x20] sm:$0xff pattern:$0x73625140]
  %1835 = vrot.lane.b32.xlu0 %v1833, 104
  %v1836 = vpop.permute.xlu0 %1835
  %1837 = vrot.lane.b32.xlu0 %v1834, 104
  %v1838 = vpop.permute.xlu0 %1837
  %v1839 = vsel %vm198, %v1823, 0
  %v1841 = vsel %vm198, %v1836, 0
  %v1843 = vsel %vm198, %v1838, 0
  %1845 = vmatpush.xpose.msra.mxu0 0.0
  %1846 = vmatpush.xpose.msra.mxu0 0.0
  %1847 = vmatpush.xpose.msra.mxu0 0.0
  %1848 = vmatpush.xpose.msra.mxu0 0.0
  %1849 = vmatpush.xpose.msra.mxu0 0.0
  %1850 = vmatpush.xpose.msra.mxu0 0.0
  %1851 = vmatpush.xpose.msra.mxu0 0.0
  %1852 = vmatpush.xpose.msra.mxu0 0.0
  %1853 = vmatpush.xpose.msra.mxu0 0.0
  %1854 = vmatpush.xpose.msra.mxu0 0.0
  %1855 = vmatpush.xpose.msra.mxu0 0.0
  %1856 = vmatpush.xpose.msra.mxu0 0.0
  %1857 = vmatpush.xpose.msra.mxu0 0.0
  %1858 = vmatpush.xpose.msra.mxu0 0.0
  %1859 = vmatpush.xpose.msra.mxu0 %v1843
  %1860 = vmatpush.xpose.msra.mxu0 %v1841
  %1861 = vmatmul.f32.gmra.mxu0 %v1839
  %v1862 = vpop.f32.mrf.mxu0
  %v1863 = vadd.f32 0.0, %v1862
  %1864 = vdwg.mxu0
  %v1865 = vmul.f32 %v1820, 0.35355338
  %v1866 = vmul.f32 %v1863, 0.35355338
  %v1867 = vsel %vm1204, %v1865, -inf
  %1868 = vmax.xlane.f32.xlu0 %v1867
  %v1869 = vpop.xlane.xlu0 %1868
  %v1870 = vsel %vm1204, %v1866, -inf
  %1871 = vmax.xlane.f32.xlu0 %v1870
  %v1872 = vpop.xlane.xlu0 %1871
  %v1873 = vsub.f32 %v1865, %v1869
  %v1874 = vsub.f32 %v1866, %v1872
  %v1875 = vmul.f32 %v1873, 1.442695
  %v1876 = vpow.pop %v1875
  %v1877 = vmul.f32 %v1874, 1.442695
  %v1878 = vpow.pop %v1877
  %v1879 = vsel %vm1204, %v1876, 0.0
  %1880 = vadd.xlane.f32.xlu0 %v1879
  %v1881 = vpop.xlane.xlu0 %1880
  %v1882 = vsel %vm1204, %v1878, 0.0
  %1883 = vadd.xlane.f32.xlu0 %v1882
  %v1884 = vpop.xlane.xlu0 %1883
  %v1885 = vrcp.pop %v1881
  %v1886 = vrcp.pop %v1884
  %v1887 = vmul.f32 %v1876, %v1885
  %v1888 = vmul.f32 %v1878, %v1886
  %1889 = vst [vmem:[#allocation1] ss:$4 sm:$0xff] %v1095
  %s1890 = scalar_lea.vmem [#allocation1], 1
  %1891 = vst [vmem:[%s1890] ss:$4 sm:$0xff] %v1116
  %s1892 = scalar_lea.vmem [#allocation1], 2
  %1893 = vst [vmem:[%s1892] ss:$4 sm:$0xff] %v1117
  %s1894 = scalar_lea.vmem [#allocation1], 3
  %1895 = vst [vmem:[%s1894] ss:$4 sm:$0xff] %v1118
  %s1896 = scalar_lea.vmem [#allocation1], 32
  %1897 = vst [vmem:[%s1896] ss:$4 sm:$0xff] %v1098
  %v1898 = vld.sshfl [vmem:[#allocation1] sm:$0xff pattern:$0x73625140]
  %v1899 = vld.sshfl [vmem:[#allocation1 + $0x20] sm:$0xff pattern:$0x73625140]
  %1900 = vrot.lane.b32.xlu0 %v1898, 104
  %v1901 = vpop.permute.xlu0 %1900
  %1902 = vrot.lane.b32.xlu0 %v1899, 104
  %v1903 = vpop.permute.xlu0 %1902
  %v1906 = vsel %vm1204, %v1887, 0
  %v1908 = vsel %vm1242, %v1903, 0
  %1910 = vmatpush.msra.mxu0 0.0
  %1911 = vmatpush.msra.mxu0 0.0
  %1912 = vmatpush.msra.mxu0 0.0
  %1913 = vmatpush.msra.mxu0 0.0
  %1914 = vmatpush.msra.mxu0 0.0
  %1915 = vmatpush.msra.mxu0 0.0
  %1916 = vmatpush.msra.mxu0 0.0
  %1917 = vmatpush.msra.mxu0 0.0
  %1918 = vmatpush.msra.mxu0 0.0
  %1919 = vmatpush.msra.mxu0 0.0
  %1920 = vmatpush.msra.mxu0 0.0
  %1921 = vmatpush.msra.mxu0 0.0
  %1922 = vmatpush.msra.mxu0 0.0
  %1923 = vmatpush.msra.mxu0 0.0
  %1924 = vmatpush.msra.mxu0 %v1908
  %1925 = vmatpush.msra.mxu0 %v1901
  %1926 = vmatmul.f32.gmra.mxu0 %v1906
  %v1927 = vpop.f32.mrf.mxu0
  %v1928 = vadd.f32 0.0, %v1927
  %1929 = vdwg.mxu0
  %1930 = vst [vmem:[#allocation1] ss:$4 sm:$0xff] %v1119
  %s1931 = scalar_lea.vmem [#allocation1], 1
  %1932 = vst [vmem:[%s1931] ss:$4 sm:$0xff] %v1120
  %s1933 = scalar_lea.vmem [#allocation1], 2
  %1934 = vst [vmem:[%s1933] ss:$4 sm:$0xff] %v1121
  %s1935 = scalar_lea.vmem [#allocation1], 3
  %1936 = vst [vmem:[%s1935] ss:$4 sm:$0xff] %v1101
  %s1937 = scalar_lea.vmem [#allocation1], 32
  %1938 = vst [vmem:[%s1937] ss:$4 sm:$0xff] %v1122
  %v1939 = vld.sshfl [vmem:[#allocation1] sm:$0xff pattern:$0x73625140]
  %v1940 = vld.sshfl [vmem:[#allocation1 + $0x20] sm:$0xff pattern:$0x73625140]
  %1941 = vrot.lane.b32.xlu0 %v1939, 104
  %v1942 = vpop.permute.xlu0 %1941
  %1943 = vrot.lane.b32.xlu0 %v1940, 104
  %v1944 = vpop.permute.xlu0 %1943
  %v1947 = vsel %vm1204, %v1888, 0
  %v1949 = vsel %vm1242, %v1944, 0
  %1951 = vmatpush.msra.mxu0 0.0
  %1952 = vmatpush.msra.mxu0 0.0
  %1953 = vmatpush.msra.mxu0 0.0
  %1954 = vmatpush.msra.mxu0 0.0
  %1955 = vmatpush.msra.mxu0 0.0
  %1956 = vmatpush.msra.mxu0 0.0
  %1957 = vmatpush.msra.mxu0 0.0
  %1958 = vmatpush.msra.mxu0 0.0
  %1959 = vmatpush.msra.mxu0 0.0
  %1960 = vmatpush.msra.mxu0 0.0
  %1961 = vmatpush.msra.mxu0 0.0
  %1962 = vmatpush.msra.mxu0 0.0
  %1963 = vmatpush.msra.mxu0 0.0
  %1964 = vmatpush.msra.mxu0 0.0
  %1965 = vmatpush.msra.mxu0 %v1949
  %1966 = vmatpush.msra.mxu0 %v1942
  %1967 = vmatmul.f32.gmra.mxu0 %v1947
  %v1968 = vpop.f32.mrf.mxu0
  %v1969 = vadd.f32 0.0, %v1968
  %1970 = vdwg.mxu0
  %v1972 = vsel %vm198, %v1928, 0
  %v1975 = vsel %vm198, %v1969, 0
  %1977 = vmatpush.msra.mxu0 0.0
  %1978 = vmatpush.msra.mxu0 0.0
  %1979 = vmatpush.msra.mxu0 0.0
  %1980 = vmatpush.msra.mxu0 0.0
  %1981 = vmatpush.msra.mxu0 0.0
  %1982 = vmatpush.msra.mxu0 0.0
  %1983 = vmatpush.msra.mxu0 0.0
  %1984 = vmatpush.msra.mxu0 0.0
  %1985 = vmatpush.msra.mxu0 0.0
  %1986 = vmatpush.msra.mxu0 0.0
  %1987 = vmatpush.msra.mxu0 0.0
  %1988 = vmatpush.msra.mxu0 0.0
  %1989 = vmatpush.msra.mxu0 0.0
  %1990 = vmatpush.msra.mxu0 0.0
  %1991 = vmatpush.msra.mxu0 0.0
  %1992 = vmatpush.msra.mxu0 %v921
  %1993 = vmatmul.f32.gmra.mxu0 %v1972
  %v1994 = vpop.f32.mrf.mxu0
  %v1995 = vadd.f32 0.0, %v1994
  %1996 = vmatmul.f32.gmra.mxu0 %v1975
  %v1997 = vpop.f32.mrf.mxu0
  %v1998 = vadd.f32 0.0, %v1997
  %1999 = vdwg.mxu0
  %v2000 = vadd.f32 %v1777, %v1995
  %v2001 = vadd.f32 %v1778, %v1998
  %v2002 = vadd.f32 %v899, %v2000
  %v2003 = vadd.f32 %v900, %v2001
  %v2004 = vsel %vm114, %v2002, 0.0
  %2005 = vadd.xlane.f32.xlu0 %v2004
  %v2006 = vpop.xlane.xlu0 %2005
  %v2007 = vsel %vm114, %v2003, 0.0
  %2008 = vadd.xlane.f32.xlu0 %v2007
  %v2009 = vpop.xlane.xlu0 %2008
  %v2010 = vmul.f32 %v2006, %v856
  %v2011 = vmul.f32 %v2009, %v856
  %v2012 = vsub.f32 %v2002, %v2010
  %v2013 = vsub.f32 %v2003, %v2011
  %v2014 = vmul.f32 %v2012, %v2012
  %v2015 = vmul.f32 %v2013, %v2013
  %v2016 = vsel %vm114, %v2014, 0.0
  %2017 = vadd.xlane.f32.xlu0 %v2016
  %v2018 = vpop.xlane.xlu0 %2017
  %v2019 = vsel %vm114, %v2015, 0.0
  %2020 = vadd.xlane.f32.xlu0 %v2019
  %v2021 = vpop.xlane.xlu0 %2020
  %v2022 = vmul.f32 %v2018, %v856
  %v2023 = vmul.f32 %v2021, %v856
  %v2024 = vadd.f32 %v2022, 1e-05
  %v2025 = vadd.f32 %v2023, 1e-05
  %v2026 = vrsqrt.pop %v2024
  %v2027 = vmul.f32 %v2026, %v2024
  %v2028 = vmul.f32 %v2027, %v2026
  %v2029 = vmul.f32 0.5, %v2028
  %v2030 = vsub.f32 1.5, %v2029
  %v2031 = vmul.f32 %v2026, %v2030
  %vm2032 = vweird.f32 %v2024
  %vm2033 = vweird.f32 %v2026
  %vm2034 = vmor %vm2032, %vm2033
  %v2035 = vsel %vm2034, %v2026, %v2031
  %v2036 = vrsqrt.pop %v2025
  %v2037 = vmul.f32 %v2036, %v2025
  %v2038 = vmul.f32 %v2037, %v2036
  %v2039 = vmul.f32 0.5, %v2038
  %v2040 = vsub.f32 1.5, %v2039
  %v2041 = vmul.f32 %v2036, %v2040
  %vm2042 = vweird.f32 %v2025
  %vm2043 = vweird.f32 %v2036
  %vm2044 = vmor %vm2042, %vm2043
  %v2045 = vsel %vm2044, %v2036, %v2041
  %v2046 = vmul.f32 %v2012, %v2035
  %v2047 = vmul.f32 %v2013, %v2045
  %v2048 = vperm.slane %v98, 2
  %v2049 = vmul.f32 %v2046, %v2048
  %v2050 = vmul.f32 %v2047, %v2048
  %v2051 = vperm.slane %v98, 3
  %v2052 = vadd.f32 %v2049, %v2051
  %v2053 = vadd.f32 %v2050, %v2051
  %v2054 = vld [vmem:[%s12] sm:$0xff]
  %v2055 = vld [vmem:[%s12 + $0x8] sm:$0xff]
  %v2056 = vld [vmem:[%s12 + $0x10] sm:$0xff]
  %v2057 = vld [vmem:[%s12 + $0x18] sm:$0xff]
  %v2058 = vld [vmem:[%s13] sm:$0x1]
  %v2060 = vperm.slane %v2058, 0
  %v2063 = vsel %vm114, %v2052, 0
  %v2066 = vsel %vm114, %v2053, 0
  %2068 = vmatpush.msra.mxu0 0.0
  %2069 = vmatpush.msra.mxu0 0.0
  %2070 = vmatpush.msra.mxu0 0.0
  %2071 = vmatpush.msra.mxu0 0.0
  %2072 = vmatpush.msra.mxu0 0.0
  %2073 = vmatpush.msra.mxu0 0.0
  %2074 = vmatpush.msra.mxu0 0.0
  %2075 = vmatpush.msra.mxu0 0.0
  %2076 = vmatpush.msra.mxu0 0.0
  %2077 = vmatpush.msra.mxu0 0.0
  %2078 = vmatpush.msra.mxu0 0.0
  %2079 = vmatpush.msra.mxu0 0.0
  %2080 = vmatpush.msra.mxu0 %v2057
  %2081 = vmatpush.msra.mxu0 %v2056
  %2082 = vmatpush.msra.mxu0 %v2055
  %2083 = vmatpush.msra.mxu0 %v2054
  %2084 = vmatmul.f32.gmra.mxu0 %v2063
  %v2085 = vpop.f32.mrf.mxu0
  %v2086 = vadd.f32 %v2060, %v2085
  %2087 = vmatmul.f32.gmra.mxu0 %v2066
  %v2088 = vpop.f32.mrf.mxu0
  %v2089 = vadd.f32 %v2060, %v2088
  %2090 = vdwg.mxu0
  %v2091 = vmax.f32 %v2086, 0.0
  %v2092 = vmax.f32 %v2089, 0.0
  %v2093 = vld [vmem:[%s14] sm:$0xff]
  %v2094 = vld [vmem:[%s14 + $0x8] sm:$0xff]
  %v2095 = vld [vmem:[%s14 + $0x10] sm:$0xff]
  %v2096 = vld [vmem:[%s14 + $0x18] sm:$0xff]
  %v2097 = vld [vmem:[%s14 + $0x20] sm:$0xff]
  %v2098 = vld [vmem:[%s14 + $0x28] sm:$0xff]
  %v2099 = vld [vmem:[%s14 + $0x30] sm:$0xff]
  %v2100 = vld [vmem:[%s14 + $0x38] sm:$0xff]
  %v2101 = vld [vmem:[%s15] sm:$0x1]
  %v2103 = vperm.slane %v2101, 0
  %vm2105 = vcmask 523264
  %v2107 = vsel %vm2105, %v2091, 0
  %v2110 = vsel %vm2105, %v2092, 0
  %2112 = vmatpush.msra.mxu0 0.0
  %2113 = vmatpush.msra.mxu0 0.0
  %2114 = vmatpush.msra.mxu0 0.0
  %2115 = vmatpush.msra.mxu0 0.0
  %2116 = vmatpush.msra.mxu0 0.0
  %2117 = vmatpush.msra.mxu0 0.0
  %2118 = vmatpush.msra.mxu0 0.0
  %2119 = vmatpush.msra.mxu0 0.0
  %2120 = vmatpush.msra.mxu0 %v2100
  %2121 = vmatpush.msra.mxu0 %v2099
  %2122 = vmatpush.msra.mxu0 %v2098
  %2123 = vmatpush.msra.mxu0 %v2097
  %2124 = vmatpush.msra.mxu0 %v2096
  %2125 = vmatpush.msra.mxu0 %v2095
  %2126 = vmatpush.msra.mxu0 %v2094
  %2127 = vmatpush.msra.mxu0 %v2093
  %2128 = vmatmul.f32.gmra.mxu0 %v2107
  %v2129 = vpop.f32.mrf.mxu0
  %v2130 = vadd.f32 %v2103, %v2129
  %2131 = vmatmul.f32.gmra.mxu0 %v2110
  %v2132 = vpop.f32.mrf.mxu0
  %v2133 = vadd.f32 %v2103, %v2132
  %2134 = vdwg.mxu0
  %v2135 = vadd.f32 %v2052, %v2130
  %v2136 = vadd.f32 %v2053, %v2133
  %v2137 = vsel %vm114, %v2135, 0.0
  %2138 = vadd.xlane.f32.xlu0 %v2137
  %v2139 = vpop.xlane.xlu0 %2138
  %v2140 = vsel %vm114, %v2136, 0.0
  %2141 = vadd.xlane.f32.xlu0 %v2140
  %v2142 = vpop.xlane.xlu0 %2141
  %v2143 = vmul.f32 %v2139, %v856
  %v2144 = vmul.f32 %v2142, %v856
  %v2145 = vsub.f32 %v2135, %v2143
  %v2146 = vsub.f32 %v2136, %v2144
  %v2147 = vmul.f32 %v2145, %v2145
  %v2148 = vmul.f32 %v2146, %v2146
  %v2149 = vsel %vm114, %v2147, 0.0
  %2150 = vadd.xlane.f32.xlu0 %v2149
  %v2151 = vpop.xlane.xlu0 %2150
  %v2152 = vsel %vm114, %v2148, 0.0
  %2153 = vadd.xlane.f32.xlu0 %v2152
  %v2154 = vpop.xlane.xlu0 %2153
  %v2155 = vmul.f32 %v2151, %v856
  %v2156 = vmul.f32 %v2154, %v856
  %v2157 = vadd.f32 %v2155, 1e-05
  %v2158 = vadd.f32 %v2156, 1e-05
  %v2159 = vrsqrt.pop %v2157
  %v2160 = vmul.f32 %v2159, %v2157
  %v2161 = vmul.f32 %v2160, %v2159
  %v2162 = vmul.f32 0.5, %v2161
  %v2163 = vsub.f32 1.5, %v2162
  %v2164 = vmul.f32 %v2159, %v2163
  %vm2165 = vweird.f32 %v2157
  %vm2166 = vweird.f32 %v2159
  %vm2167 = vmor %vm2165, %vm2166
  %v2168 = vsel %vm2167, %v2159, %v2164
  %v2169 = vrsqrt.pop %v2158
  %v2170 = vmul.f32 %v2169, %v2158
  %v2171 = vmul.f32 %v2170, %v2169
  %v2172 = vmul.f32 0.5, %v2171
  %v2173 = vsub.f32 1.5, %v2172
  %v2174 = vmul.f32 %v2169, %v2173
  %vm2175 = vweird.f32 %v2158
  %vm2176 = vweird.f32 %v2169
  %vm2177 = vmor %vm2175, %vm2176
  %v2178 = vsel %vm2177, %v2169, %v2174
  %v2179 = vmul.f32 %v2145, %v2168
  %v2180 = vmul.f32 %v2146, %v2178
  %v2181 = vperm.slane %v98, 4
  %v2182 = vmul.f32 %v2179, %v2181
  %v2183 = vmul.f32 %v2180, %v2181
  %v2184 = vperm.slane %v98, 5
  %v2185 = vadd.f32 %v2182, %v2184
  %v2186 = vadd.f32 %v2183, %v2184
  %2187 = vst.msk [vmem:[%s17] sm:$0xff] %vm114, %v2185
  %2188 = vst.msk [vmem:[%s17 + $0x8] sm:$0xff] %vm114, %v2186
  // Predicated region
  $region70: #{transformer_decoder_layer.1} parent=0 // pred_check
    _
  $region71: #{transformer_decoder_layer.1} parent=0 // pred_check_branch
    %2190 = sbr.rel (0) target = $region73
  $region72: #{transformer_decoder_layer.1} parent=0 // pred_region
    _
  $region73: #{transformer_decoder_layer.1} parent=0 // pred_fallthru
    _
  // Predicated region
  $region74: #{transformer_decoder_layer.1} parent=0 // pred_check
    _
  $region75: #{transformer_decoder_layer.1} parent=0 // pred_check_branch
    %2192 = sbr.rel (0) target = $region77
  $region76: #{transformer_decoder_layer.1} parent=0 // pred_region
    _
  $region77: #{transformer_decoder_layer.1} parent=0 // pred_fallthru
    _

</llo_original>
